<compile_context>
chip_gen: v5e
topology: v5e:2x2
jax: 0.10.0
libtpu: 0.0.40
codegen_flags: <defaults>
</compile_context>

<pallas_src>
import jax
import jax.numpy as jnp
from jax.experimental import pallas as pl
from jax.experimental.pallas import tpu as pltpu

# ---------------- model dimensions (small, consistent with the module) -----------------
CHAR_EMB  = 16      # char_embedding_dim
WORD_EMB  = 16      # word_embedding_dim
HIDDEN    = 32      # hidden_dim
H         = HIDDEN // 2          # per-direction hidden size (16)
CHAR_SIZE = 50
WORD_SIZE = 100
TAG_POS   = 8
TAG_NER   = 6
SEQ_LEN   = 8       # number of words in the sentence
CHAR_LEN  = 6       # chars per word
# TODO(synk): ragged per-word char sequences (PyTorch module allows them) not supported;
#             fixed CHAR_LEN is used.

GATES = 4 * HIDDEN          # 128 fused gate lanes: [i_f|i_b | f_f|f_b | g_f|g_b | o_f|o_b]

# 8-aligned padded vocab sizes for the pre-projected embedding tables
CHAR_ROWS = 56
WORD_ROWS = 104

# ---------------- packed slab row offsets (everything lives in one (520,128) slab) -----
OFF_CHAR_F  = 0                              # char_table @ W_ih_fwd      (56, 128)
OFF_CHAR_B  = OFF_CHAR_F + CHAR_ROWS         # char_table @ W_ih_bwd      (56, 128)
OFF_WORD_F  = OFF_CHAR_B + CHAR_ROWS         # word_table @ W_ih_fwd[:16] (104,128)
OFF_WORD_B  = OFF_WORD_F + WORD_ROWS         # word_table @ W_ih_bwd[:16] (104,128)
OFF_C_WHH   = OFF_WORD_B + WORD_ROWS         # char LSTM recurrent (block-diag) (32,128)
OFF_S_WHH   = OFF_C_WHH + HIDDEN             # sent LSTM recurrent (block-diag) (32,128)
OFF_S_CTX_F = OFF_S_WHH + HIDDEN             # sent W_ih_fwd, ctx rows          (32,128)
OFF_S_CTX_B = OFF_S_CTX_F + HIDDEN           # sent W_ih_bwd, ctx rows          (32,128)
OFF_A_W     = OFF_S_CTX_B + HIDDEN           # attn Linear weight (lane-padded) (32,128)
OFF_HEAD_W  = OFF_A_W + HIDDEN               # merged pos|ner head weight       (32,128)
OFF_VEC     = OFF_HEAD_W + HIDDEN            # 8 vector rows below
ROW_C_BIAS  = OFF_VEC + 0
ROW_S_BIAS  = OFF_VEC + 1
ROW_A_B     = OFF_VEC + 2
ROW_A_V     = OFF_VEC + 3
ROW_HEAD_B  = OFF_VEC + 4
SLAB_ROWS   = OFF_VEC + 8                    # 520


# ---------------- in-kernel fused (fwd+bwd) LSTM over precomputed input contributions --
def _bidir_lstm(x_contribs, whh):
    """x_contribs[t]: (rows, 128) = x_t @ W_ih (both dirs, gate layout i|f|g|o) + bias.
    whh: (HIDDEN, 128) block-diagonal recurrent weight.
    Returns list over original time t of (rows, HIDDEN) = [h_fwd(t) | h_bwd(t)]."""
    T = len(x_contribs)
    rows = x_contribs[0].shape[0]
    h = jnp.zeros((rows, HIDDEN), jnp.float32)
    c = jnp.zeros((rows, HIDDEN), jnp.float32)
    hf, hb = [], []
    for t in range(T):                                   # fully unrolled recurrence
        gates = x_contribs[t] + jnp.dot(h, whh, preferred_element_type=jnp.float32)
        sig = jax.nn.sigmoid(gates)                      # 1 EUP push covers i, f, o
        th = jnp.tanh(gates)                             # 1 EUP push covers g
        i_g = sig[:, 0 * HIDDEN:1 * HIDDEN]
        f_g = sig[:, 1 * HIDDEN:2 * HIDDEN]
        g_g = th[:, 2 * HIDDEN:3 * HIDDEN]
        o_g = sig[:, 3 * HIDDEN:4 * HIDDEN]
        c = f_g * c + i_g * g_g
        h = o_g * jnp.tanh(c)                            # 3rd EUP push
        hf.append(h[:, :H])                              # fwd hidden for time t
        hb.append(h[:, H:])                              # bwd hidden for time T-1-t
    return [jnp.concatenate([hf[t], hb[T - 1 - t]], axis=1) for t in range(T)]


# ---------------- the single fused kernel ----------------------------------------------
def fused_tagger_kernel(wid_ref, cid_ref, slab_ref, out_ref):
    Tw, Tc = cid_ref.shape

    # ---- char bi-LSTM inputs: in-kernel one-hot gather fused with W_ih projection ----
    cid = cid_ref[...]                                               # (Tw, Tc) int32
    char_iota = jax.lax.broadcasted_iota(jnp.int32, (Tw, CHAR_ROWS), 1)
    oh_char = jnp.concatenate(
        [(cid[:, t:t + 1] == char_iota).astype(jnp.float32) for t in range(Tc)],
        axis=0)                                                      # (Tc*Tw, 56) pos-major
    proj_f = jnp.dot(oh_char, slab_ref[OFF_CHAR_F:OFF_CHAR_F + CHAR_ROWS, :],
                     preferred_element_type=jnp.float32)             # (Tc*Tw, 128)
    proj_b = jnp.dot(oh_char, slab_ref[OFF_CHAR_B:OFF_CHAR_B + CHAR_ROWS, :],
                     preferred_element_type=jnp.float32)
    c_bias = slab_ref[ROW_C_BIAS:ROW_C_BIAS + 1, :]
    cx = [proj_f[t * Tw:(t + 1) * Tw, :]
          + proj_b[(Tc - 1 - t) * Tw:(Tc - t) * Tw, :] + c_bias for t in range(Tc)]

    # ---- char bi-LSTM recurrence (Tc serial steps, batched over all words) ----
    # NOTE: fully unrolled; live values fit in ~45 vregs (spills, if any, are off-chain).
    c_whh = slab_ref[OFF_C_WHH:OFF_C_WHH + HIDDEN, :]
    char_out = _bidir_lstm(cx, c_whh)                                # Tc x (Tw, HIDDEN)

    # ---- Attn('self') over char positions: elementwise softmax over unrolled list ----
    a_w = slab_ref[OFF_A_W:OFF_A_W + HIDDEN, :]
    a_b = slab_ref[ROW_A_B:ROW_A_B + 1, :]
    a_v = slab_ref[ROW_A_V:ROW_A_V + 1, :]
    lstm_all = jnp.concatenate(char_out, axis=0)                     # (Tc*Tw, HIDDEN)
    energy = jnp.tanh(jnp.dot(lstm_all, a_w, preferred_element_type=jnp.float32) + a_b)
    s_all = jnp.sum(a_v * energy, axis=1, keepdims=True)             # (Tc*Tw, 1)
    s = [s_all[t * Tw:(t + 1) * Tw, :] for t in range(Tc)]           # Tc x (Tw, 1)
    m = s[0]
    for t in range(1, Tc):
        m = jnp.maximum(m, s[t])
    e = [jnp.exp(s[t] - m) for t in range(Tc)]
    denom = e[0]
    for t in range(1, Tc):
        denom = denom + e[t]
    inv = pl.reciprocal(denom, approx=True)        # EUP approx; alpha rows sum to ~1
    ctx = (e[0] * inv) * char_out[0]
    for t in range(1, Tc):
        ctx = ctx + (e[t] * inv) * char_out[t]                       # (Tw, HIDDEN)

    # ---- sentence bi-LSTM inputs: word one-hot gather (fused W_ih) + ctx projection --
    wid = wid_ref[...]                                               # (Tw, 1) int32
    word_iota = jax.lax.broadcasted_iota(jnp.int32, (Tw, WORD_ROWS), 1)
    oh_word = (wid == word_iota).astype(jnp.float32)                 # (Tw, 104)
    sp_f = (jnp.dot(oh_word, slab_ref[OFF_WORD_F:OFF_WORD_F + WORD_ROWS, :],
                    preferred_element_type=jnp.float32)
            + jnp.dot(ctx, slab_ref[OFF_S_CTX_F:OFF_S_CTX_F + HIDDEN, :],
                      preferred_element_type=jnp.float32))           # (Tw, 128)
    sp_b = (jnp.dot(oh_word, slab_ref[OFF_WORD_B:OFF_WORD_B + WORD_ROWS, :],
                    preferred_element_type=jnp.float32)
            + jnp.dot(ctx, slab_ref[OFF_S_CTX_B:OFF_S_CTX_B + HIDDEN, :],
                      preferred_element_type=jnp.float32))
    s_bias = slab_ref[ROW_S_BIAS:ROW_S_BIAS + 1, :]
    sx = [sp_f[t:t + 1, :] + sp_b[Tw - 1 - t:Tw - t, :] + s_bias for t in range(Tw)]

    # ---- sentence bi-LSTM recurrence (Tw serial steps, rows=1) ----
    s_whh = slab_ref[OFF_S_WHH:OFF_S_WHH + HIDDEN, :]
    sent_out = jnp.concatenate(_bidir_lstm(sx, s_whh), axis=0)       # (Tw, HIDDEN)

    # ---- merged POS|NER head + per-head log-softmax, single merged output ----
    head_w = slab_ref[OFF_HEAD_W:OFF_HEAD_W + HIDDEN, :]
    head_b = slab_ref[ROW_HEAD_B:ROW_HEAD_B + 1, :]
    logits = jnp.dot(sent_out, head_w, preferred_element_type=jnp.float32) + head_b

    def log_softmax(z):
        zm = z - jnp.max(z, axis=1, keepdims=True)
        return zm - jnp.log(jnp.sum(jnp.exp(zm), axis=1, keepdims=True))

    out_ref[...] = jnp.concatenate(
        [log_softmax(logits[:, :TAG_POS]),
         log_softmax(logits[:, TAG_POS:TAG_POS + TAG_NER])], axis=1)  # (Tw, 14)


def run_fused(word_ids, char_ids, slab):
    Tw = word_ids.shape[0]
    return pl.pallas_call(
        fused_tagger_kernel,
        out_shape=jax.ShapeDtypeStruct((Tw, TAG_POS + TAG_NER), jnp.float32),
        grid=(1,),
        in_specs=[pl.BlockSpec(word_ids.shape, lambda i: (0, 0)),
                  pl.BlockSpec(char_ids.shape, lambda i: (0, 0)),
                  pl.BlockSpec(slab.shape, lambda i: (0, 0))],
        out_specs=pl.BlockSpec((Tw, TAG_POS + TAG_NER), lambda i: (0, 0)),
        compiler_params=pltpu.CompilerParams(dimension_semantics=("arbitrary",)),
    )(word_ids, char_ids, slab)


# ---------------- forward: only tiny index arrays + the slab cross the boundary --------
def forward(kparams, word_seq, char_seq):
    word_ids = word_seq.reshape(-1, 1).astype(jnp.int32)    # (T, 1)
    char_ids = char_seq.astype(jnp.int32)                   # (T, CHAR_LEN)
    out = run_fused(word_ids, char_ids, kparams['slab'])
    return out[:, :TAG_POS], out[:, TAG_POS:TAG_POS + TAG_NER]


# ---------------- parameters (deterministic, synthetic) --------------------------------
def init_params(key):
    ks = jax.random.split(key, 22)

    def nrm(k, shape, scale=0.1):
        return (scale * jax.random.normal(k, shape)).astype(jnp.float32)

    DIN = WORD_EMB + HIDDEN
    return {
        'char_table': nrm(ks[0], (CHAR_SIZE, CHAR_EMB), 1.0),
        'word_table': nrm(ks[1], (WORD_SIZE, WORD_EMB), 1.0),
        # char bi-LSTM (weights transposed: x @ W_ih^T -> (in, 4H)); bias = b_ih + b_hh
        'c_wih_f': nrm(ks[2], (CHAR_EMB, 4 * H)),
        'c_whh_f': nrm(ks[3], (H, 4 * H)),
        'c_b_f':   nrm(ks[4], (1, 4 * H)),
        'c_wih_b': nrm(ks[5], (CHAR_EMB, 4 * H)),
        'c_whh_b': nrm(ks[6], (H, 4 * H)),
        'c_b_b':   nrm(ks[7], (1, 4 * H)),
        # Attn('self'): Linear(hidden, hidden) (transposed) + bias + self.w
        'a_w': nrm(ks[8], (HIDDEN, HIDDEN)),
        'a_b': nrm(ks[9], (1, HIDDEN)),
        'a_v': nrm(ks[10], (1, HIDDEN)),
        # sentence bi-LSTM over [word_emb ; char_ctx]
        's_wih_f': nrm(ks[11], (DIN, 4 * H)),
        's_whh_f': nrm(ks[12], (H, 4 * H)),
        's_b_f':   nrm(ks[13], (1, 4 * H)),
        's_wih_b': nrm(ks[14], (DIN, 4 * H)),
        's_whh_b': nrm(ks[15], (H, 4 * H)),
        's_b_b':   nrm(ks[16], (1, 4 * H)),
        # tag heads (transposed)
        'pos_w': nrm(ks[17], (HIDDEN, TAG_POS)),
        'pos_b': nrm(ks[18], (1, TAG_POS)),
        'ner_w': nrm(ks[19], (HIDDEN, TAG_NER)),
        'ner_b': nrm(ks[20], (1, TAG_NER)),
    }


# ---------------- one-time host-side packing into the single (520,128) slab ------------
def _place_dir(w, is_bwd):
    """(D, 4H) one-direction gate weight with columns [i|f|g|o] (each H wide) ->
    (D, 128) fused layout [i_f|i_b|f_f|f_b|g_f|g_b|o_f|o_b]; other direction's lanes 0."""
    D = w.shape[0]
    out = jnp.zeros((D, GATES), jnp.float32)
    for g in range(4):
        dst = g * HIDDEN + (H if is_bwd else 0)
        out = out.at[:, dst:dst + H].set(w[:, g * H:(g + 1) * H])
    return out


def _pad_rows(x, rows):
    return jnp.zeros((rows, x.shape[1]), jnp.float32).at[:x.shape[0], :].set(x)


def _pad_lanes(x):
    return jnp.zeros((x.shape[0], GATES), jnp.float32).at[:, :x.shape[1]].set(x)


def pack_params(p):
    hi = jax.lax.Precision.HIGHEST
    mm = lambda a, b: jnp.matmul(a, b, precision=hi)
    # embedding gather fused with LSTM input projection: table @ W_ih (weight folding)
    char_tf = _pad_rows(mm(p['char_table'], _place_dir(p['c_wih_f'], False)), CHAR_ROWS)
    char_tb = _pad_rows(mm(p['char_table'], _place_dir(p['c_wih_b'], True)), CHAR_ROWS)
    word_tf = _pad_rows(mm(p['word_table'], _place_dir(p['s_wih_f'][:WORD_EMB], False)),
                        WORD_ROWS)
    word_tb = _pad_rows(mm(p['word_table'], _place_dir(p['s_wih_b'][:WORD_EMB], True)),
                        WORD_ROWS)
    c_whh = jnp.concatenate([_place_dir(p['c_whh_f'], False),
                             _place_dir(p['c_whh_b'], True)], axis=0)   # (32,128)
    s_whh = jnp.concatenate([_place_dir(p['s_whh_f'], False),
                             _place_dir(p['s_whh_b'], True)], axis=0)   # (32,128)
    s_ctx_f = _place_dir(p['s_wih_f'][WORD_EMB:], False)                # (32,128)
    s_ctx_b = _place_dir(p['s_wih_b'][WORD_EMB:], True)                 # (32,128)
    a_w = _pad_lanes(p['a_w'])                                          # (32,128)
    head_w = _pad_lanes(jnp.concatenate([p['pos_w'], p['ner_w']], axis=1))  # (32,128)
    vec = jnp.zeros((8, GATES), jnp.float32)
    vec = vec.at[0:1, :].set(_place_dir(p['c_b_f'], False) + _place_dir(p['c_b_b'], True))
    vec = vec.at[1:2, :].set(_place_dir(p['s_b_f'], False) + _place_dir(p['s_b_b'], True))
    vec = vec.at[2:3, :].set(_pad_lanes(p['a_b']))
    vec = vec.at[3:4, :].set(_pad_lanes(p['a_v']))
    vec = vec.at[4:5, :].set(_pad_lanes(jnp.concatenate([p['pos_b'], p['ner_b']], axis=1)))
    slab = jnp.concatenate([char_tf, char_tb, word_tf, word_tb,
                            c_whh, s_whh, s_ctx_f, s_ctx_b, a_w, head_w, vec], axis=0)
    assert slab.shape == (SLAB_ROWS, GATES)
    return {'slab': slab.astype(jnp.float32)}


# ---------------- pure-JAX reference (mirrors the PyTorch module semantics) ------------
def ref_forward(p, word_seq, char_seq):
    Hh = HIDDEN // 2

    def lstm_dir(x, wih, whh, b, reverse):
        T = x.shape[0]
        idx = range(T - 1, -1, -1) if reverse else range(T)
        h = jnp.zeros((1, Hh), jnp.float32)
        c = jnp.zeros((1, Hh), jnp.float32)
        outs = [None] * T
        for t in idx:
            gates = x[t:t + 1] @ wih + h @ whh + b
            i = jax.nn.sigmoid(gates[:, :Hh])
            f = jax.nn.sigmoid(gates[:, Hh:2 * Hh])
            g = jnp.tanh(gates[:, 2 * Hh:3 * Hh])
            o = jax.nn.sigmoid(gates[:, 3 * Hh:])
            c = f * c + i * g
            h = o * jnp.tanh(c)
            outs[t] = h
        return jnp.concatenate(outs, axis=0)

    def bilstm(x, wf, uf, bf, wb, ub, bb):
        return jnp.concatenate([lstm_dir(x, wf, uf, bf, False),
                                lstm_dir(x, wb, ub, bb, True)], axis=1)

    word_emb = p['word_table'][word_seq]
    char_emb = p['char_table'][char_seq]                  # (T, Tc, CE)
    ctx_list = []
    for w in range(char_emb.shape[0]):
        lo = bilstm(char_emb[w], p['c_wih_f'], p['c_whh_f'], p['c_b_f'],
                    p['c_wih_b'], p['c_whh_b'], p['c_b_b'])        # (Tc, HIDDEN)
        energy = jnp.tanh(lo @ p['a_w'] + p['a_b'])
        s = jnp.sum(p['a_v'] * energy, axis=1)
        alpha = jax.nn.softmax(s)
        ctx_list.append((alpha[:, None] * lo).sum(axis=0, keepdims=True))
    ctx = jnp.concatenate(ctx_list, axis=0)               # (T, HIDDEN)
    wcc = jnp.concatenate([word_emb, ctx], axis=1)
    lo = bilstm(wcc, p['s_wih_f'], p['s_whh_f'], p['s_b_f'],
                p['s_wih_b'], p['s_whh_b'], p['s_b_b'])   # (T, HIDDEN)
    pos = jax.nn.log_softmax(lo @ p['pos_w'] + p['pos_b'], axis=1)
    ner = jax.nn.log_softmax(lo @ p['ner_w'] + p['ner_b'], axis=1)
    return pos, ner


if __name__ == "__main__":
    key = jax.random.PRNGKey(0)
    pkey, wkey, ckey = jax.random.split(key, 3)
    params = init_params(pkey)
    kparams = pack_params(params)

    text_word_seq = jax.random.randint(wkey, (SEQ_LEN,), 0, WORD_SIZE, dtype=jnp.int32)
    text_char_seq = jax.random.randint(ckey, (SEQ_LEN, CHAR_LEN), 0, CHAR_SIZE, dtype=jnp.int32)

    fwd = jax.jit(forward)
    tag_scores_pos, tag_scores_ner = fwd(kparams, text_word_seq, text_char_seq)
    jax.block_until_ready((tag_scores_pos, tag_scores_ner))

    assert tag_scores_pos.shape == (SEQ_LEN, TAG_POS)
    assert tag_scores_ner.shape == (SEQ_LEN, TAG_NER)
    # log_softmax rows should sum to ~1 after exp
    assert bool(jnp.all(jnp.abs(jnp.sum(jnp.exp(tag_scores_pos), axis=1) - 1.0) < 1e-4))
    assert bool(jnp.all(jnp.abs(jnp.sum(jnp.exp(tag_scores_ner), axis=1) - 1.0) < 1e-4))

    # compare against the pure-JAX reference (tolerance allows the EUP approx reciprocal)
    ref_pos, ref_ner = jax.jit(ref_forward)(params, text_word_seq, text_char_seq)
    assert bool(jnp.max(jnp.abs(tag_scores_pos - ref_pos)) < 5e-2)
    assert bool(jnp.max(jnp.abs(tag_scores_ner - ref_ner)) < 5e-2)
    print("KERNEL_OK")
</pallas_src>

<mosaic_0001>
module attributes {stable_mosaic.version = 11 : i64} {
  func.func @fused_tagger_kernel(%arg0: i32, %arg1: memref<8x1xi32, #tpu.memory_space<vmem>>, %arg2: memref<8x6xi32, #tpu.memory_space<vmem>>, %arg3: memref<520x128xf32, #tpu.memory_space<vmem>>, %arg4: memref<8x14xf32, #tpu.memory_space<vmem>>) attributes {dimension_semantics = [#tpu.dimension_semantics<arbitrary>], iteration_bounds = array<i64: 1>, scalar_prefetch = 0 : i64, scratch_operands = 0 : i64, tpu.core_type = #tpu.core_type<tc>, window_params = [{pipeline_mode = #tpu.pipeline_mode<synchronous>, transform_indices = @transform_0, window_bounds = array<i64: 8, 1>}, {pipeline_mode = #tpu.pipeline_mode<synchronous>, transform_indices = @transform_1, window_bounds = array<i64: 8, 6>}, {pipeline_mode = #tpu.pipeline_mode<synchronous>, transform_indices = @transform_2, window_bounds = array<i64: 520, 128>}, {pipeline_mode = #tpu.pipeline_mode<synchronous>, transform_indices = @transform_3, window_bounds = array<i64: 8, 14>}]} {
    %c0 = arith.constant 0 : index
    %c0_0 = arith.constant 0 : index
    %0 = vector.load %arg2[%c0, %c0_0] : memref<8x6xi32, #tpu.memory_space<vmem>>, vector<8x6xi32>
    %1 = tpu.iota {dimensions = array<i32: 1>} : vector<8x56xi32>
    %2 = vector.extract_strided_slice %0 {offsets = [0, 0], sizes = [8, 1], strides = [1, 1]} : vector<8x6xi32> to vector<8x1xi32>
    %3 = vector.broadcast %2 : vector<8x1xi32> to vector<8x56xi32>
    %4 = arith.cmpi eq, %3, %1 : vector<8x56xi32>
    %5 = arith.extui %4 : vector<8x56xi1> to vector<8x56xi32>
    %6 = arith.sitofp %5 : vector<8x56xi32> to vector<8x56xf32>
    %7 = vector.extract_strided_slice %0 {offsets = [0, 1], sizes = [8, 1], strides = [1, 1]} : vector<8x6xi32> to vector<8x1xi32>
    %8 = vector.broadcast %7 : vector<8x1xi32> to vector<8x56xi32>
    %9 = arith.cmpi eq, %8, %1 : vector<8x56xi32>
    %10 = arith.extui %9 : vector<8x56xi1> to vector<8x56xi32>
    %11 = arith.sitofp %10 : vector<8x56xi32> to vector<8x56xf32>
    %12 = vector.extract_strided_slice %0 {offsets = [0, 2], sizes = [8, 1], strides = [1, 1]} : vector<8x6xi32> to vector<8x1xi32>
    %13 = vector.broadcast %12 : vector<8x1xi32> to vector<8x56xi32>
    %14 = arith.cmpi eq, %13, %1 : vector<8x56xi32>
    %15 = arith.extui %14 : vector<8x56xi1> to vector<8x56xi32>
    %16 = arith.sitofp %15 : vector<8x56xi32> to vector<8x56xf32>
    %17 = vector.extract_strided_slice %0 {offsets = [0, 3], sizes = [8, 1], strides = [1, 1]} : vector<8x6xi32> to vector<8x1xi32>
    %18 = vector.broadcast %17 : vector<8x1xi32> to vector<8x56xi32>
    %19 = arith.cmpi eq, %18, %1 : vector<8x56xi32>
    %20 = arith.extui %19 : vector<8x56xi1> to vector<8x56xi32>
    %21 = arith.sitofp %20 : vector<8x56xi32> to vector<8x56xf32>
    %22 = vector.extract_strided_slice %0 {offsets = [0, 4], sizes = [8, 1], strides = [1, 1]} : vector<8x6xi32> to vector<8x1xi32>
    %23 = vector.broadcast %22 : vector<8x1xi32> to vector<8x56xi32>
    %24 = arith.cmpi eq, %23, %1 : vector<8x56xi32>
    %25 = arith.extui %24 : vector<8x56xi1> to vector<8x56xi32>
    %26 = arith.sitofp %25 : vector<8x56xi32> to vector<8x56xf32>
    %27 = vector.extract_strided_slice %0 {offsets = [0, 5], sizes = [8, 1], strides = [1, 1]} : vector<8x6xi32> to vector<8x1xi32>
    %28 = vector.broadcast %27 : vector<8x1xi32> to vector<8x56xi32>
    %29 = arith.cmpi eq, %28, %1 : vector<8x56xi32>
    %30 = arith.extui %29 : vector<8x56xi1> to vector<8x56xi32>
    %31 = arith.sitofp %30 : vector<8x56xi32> to vector<8x56xf32>
    %32 = tpu.concatenate %6, %11, %16, %21, %26, %31 in 0 : vector<8x56xf32>, vector<8x56xf32>, vector<8x56xf32>, vector<8x56xf32>, vector<8x56xf32>, vector<8x56xf32> -> vector<48x56xf32>
    %c0_1 = arith.constant 0 : index
    %c0_2 = arith.constant 0 : index
    %33 = vector.load %arg3[%c0_1, %c0_2] : memref<520x128xf32, #tpu.memory_space<vmem>>, vector<56x128xf32>
    %cst = arith.constant dense<0.000000e+00> : vector<48x128xf32>
    %34 = tpu.matmul %32, %33, %cst {dimension_numbers = #tpu.dot_dimension_numbers<[1], [0], [0], [1], [0, 0, 1, 1], [], []>} : vector<48x56xf32>, vector<56x128xf32>, vector<48x128xf32> -> vector<48x128xf32>
    %c56 = arith.constant 56 : index
    %c0_3 = arith.constant 0 : index
    %35 = vector.load %arg3[%c56, %c0_3] : memref<520x128xf32, #tpu.memory_space<vmem>>, vector<56x128xf32>
    %cst_4 = arith.constant dense<0.000000e+00> : vector<48x128xf32>
    %36 = tpu.matmul %32, %35, %cst_4 {dimension_numbers = #tpu.dot_dimension_numbers<[1], [0], [0], [1], [0, 0, 1, 1], [], []>} : vector<48x56xf32>, vector<56x128xf32>, vector<48x128xf32> -> vector<48x128xf32>
    %c512 = arith.constant 512 : index
    %c0_5 = arith.constant 0 : index
    %37 = vector.load %arg3[%c512, %c0_5] : memref<520x128xf32, #tpu.memory_space<vmem>>, vector<1x128xf32>
    %38 = vector.extract_strided_slice %34 {offsets = [0, 0], sizes = [8, 128], strides = [1, 1]} : vector<48x128xf32> to vector<8x128xf32>
    %39 = vector.extract_strided_slice %36 {offsets = [40, 0], sizes = [8, 128], strides = [1, 1]} : vector<48x128xf32> to vector<8x128xf32>
    %40 = arith.addf %38, %39 : vector<8x128xf32>
    %41 = vector.broadcast %37 : vector<1x128xf32> to vector<8x128xf32>
    %42 = arith.addf %40, %41 : vector<8x128xf32>
    %43 = vector.extract_strided_slice %34 {offsets = [8, 0], sizes = [8, 128], strides = [1, 1]} : vector<48x128xf32> to vector<8x128xf32>
    %44 = vector.extract_strided_slice %36 {offsets = [32, 0], sizes = [8, 128], strides = [1, 1]} : vector<48x128xf32> to vector<8x128xf32>
    %45 = arith.addf %43, %44 : vector<8x128xf32>
    %46 = vector.broadcast %37 : vector<1x128xf32> to vector<8x128xf32>
    %47 = arith.addf %45, %46 : vector<8x128xf32>
    %48 = vector.extract_strided_slice %34 {offsets = [16, 0], sizes = [8, 128], strides = [1, 1]} : vector<48x128xf32> to vector<8x128xf32>
    %49 = vector.extract_strided_slice %36 {offsets = [24, 0], sizes = [8, 128], strides = [1, 1]} : vector<48x128xf32> to vector<8x128xf32>
    %50 = arith.addf %48, %49 : vector<8x128xf32>
    %51 = vector.broadcast %37 : vector<1x128xf32> to vector<8x128xf32>
    %52 = arith.addf %50, %51 : vector<8x128xf32>
    %53 = vector.extract_strided_slice %34 {offsets = [24, 0], sizes = [8, 128], strides = [1, 1]} : vector<48x128xf32> to vector<8x128xf32>
    %54 = vector.extract_strided_slice %36 {offsets = [16, 0], sizes = [8, 128], strides = [1, 1]} : vector<48x128xf32> to vector<8x128xf32>
    %55 = arith.addf %53, %54 : vector<8x128xf32>
    %56 = vector.broadcast %37 : vector<1x128xf32> to vector<8x128xf32>
    %57 = arith.addf %55, %56 : vector<8x128xf32>
    %58 = vector.extract_strided_slice %34 {offsets = [32, 0], sizes = [8, 128], strides = [1, 1]} : vector<48x128xf32> to vector<8x128xf32>
    %59 = vector.extract_strided_slice %36 {offsets = [8, 0], sizes = [8, 128], strides = [1, 1]} : vector<48x128xf32> to vector<8x128xf32>
    %60 = arith.addf %58, %59 : vector<8x128xf32>
    %61 = vector.broadcast %37 : vector<1x128xf32> to vector<8x128xf32>
    %62 = arith.addf %60, %61 : vector<8x128xf32>
    %63 = vector.extract_strided_slice %34 {offsets = [40, 0], sizes = [8, 128], strides = [1, 1]} : vector<48x128xf32> to vector<8x128xf32>
    %64 = vector.extract_strided_slice %36 {offsets = [0, 0], sizes = [8, 128], strides = [1, 1]} : vector<48x128xf32> to vector<8x128xf32>
    %65 = arith.addf %63, %64 : vector<8x128xf32>
    %66 = vector.broadcast %37 : vector<1x128xf32> to vector<8x128xf32>
    %67 = arith.addf %65, %66 : vector<8x128xf32>
    %c320 = arith.constant 320 : index
    %c0_6 = arith.constant 0 : index
    %68 = vector.load %arg3[%c320, %c0_6] : memref<520x128xf32, #tpu.memory_space<vmem>>, vector<32x128xf32>
    %cst_7 = arith.constant 0.000000e+00 : f32
    %69 = vector.broadcast %cst_7 : f32 to vector<8x32xf32>
    %cst_8 = arith.constant 0.000000e+00 : f32
    %70 = vector.broadcast %cst_8 : f32 to vector<8x32xf32>
    %cst_9 = arith.constant dense<0.000000e+00> : vector<8x128xf32>
    %71 = tpu.matmul %69, %68, %cst_9 {dimension_numbers = #tpu.dot_dimension_numbers<[1], [0], [0], [1], [0, 0, 1, 1], [], []>} : vector<8x32xf32>, vector<32x128xf32>, vector<8x128xf32> -> vector<8x128xf32>
    %72 = arith.addf %42, %71 : vector<8x128xf32>
    %73 = arith.negf %72 : vector<8x128xf32>
    %74 = math.exp %73 : vector<8x128xf32>
    %cst_10 = arith.constant 1.000000e+00 : f32
    %75 = vector.broadcast %cst_10 : f32 to vector<8x128xf32>
    %76 = arith.addf %75, %74 : vector<8x128xf32>
    %77 = arith.divf %75, %76 : vector<8x128xf32>
    %78 = math.tanh %72 : vector<8x128xf32>
    %79 = vector.extract_strided_slice %77 {offsets = [0, 0], sizes = [8, 32], strides = [1, 1]} : vector<8x128xf32> to vector<8x32xf32>
    %80 = vector.extract_strided_slice %77 {offsets = [0, 32], sizes = [8, 32], strides = [1, 1]} : vector<8x128xf32> to vector<8x32xf32>
    %81 = vector.extract_strided_slice %78 {offsets = [0, 64], sizes = [8, 32], strides = [1, 1]} : vector<8x128xf32> to vector<8x32xf32>
    %82 = vector.extract_strided_slice %77 {offsets = [0, 96], sizes = [8, 32], strides = [1, 1]} : vector<8x128xf32> to vector<8x32xf32>
    %83 = arith.mulf %80, %70 : vector<8x32xf32>
    %84 = arith.mulf %79, %81 : vector<8x32xf32>
    %85 = arith.addf %83, %84 : vector<8x32xf32>
    %86 = math.tanh %85 : vector<8x32xf32>
    %87 = arith.mulf %82, %86 : vector<8x32xf32>
    %88 = vector.extract_strided_slice %87 {offsets = [0, 0], sizes = [8, 16], strides = [1, 1]} : vector<8x32xf32> to vector<8x16xf32>
    %89 = vector.extract_strided_slice %87 {offsets = [0, 16], sizes = [8, 16], strides = [1, 1]} : vector<8x32xf32> to vector<8x16xf32>
    %cst_11 = arith.constant dense<0.000000e+00> : vector<8x128xf32>
    %90 = tpu.matmul %87, %68, %cst_11 {dimension_numbers = #tpu.dot_dimension_numbers<[1], [0], [0], [1], [0, 0, 1, 1], [], []>} : vector<8x32xf32>, vector<32x128xf32>, vector<8x128xf32> -> vector<8x128xf32>
    %91 = arith.addf %47, %90 : vector<8x128xf32>
    %92 = arith.negf %91 : vector<8x128xf32>
    %93 = math.exp %92 : vector<8x128xf32>
    %cst_12 = arith.constant 1.000000e+00 : f32
    %94 = vector.broadcast %cst_12 : f32 to vector<8x128xf32>
    %95 = arith.addf %94, %93 : vector<8x128xf32>
    %96 = arith.divf %94, %95 : vector<8x128xf32>
    %97 = math.tanh %91 : vector<8x128xf32>
    %98 = vector.extract_strided_slice %96 {offsets = [0, 0], sizes = [8, 32], strides = [1, 1]} : vector<8x128xf32> to vector<8x32xf32>
    %99 = vector.extract_strided_slice %96 {offsets = [0, 32], sizes = [8, 32], strides = [1, 1]} : vector<8x128xf32> to vector<8x32xf32>
    %100 = vector.extract_strided_slice %97 {offsets = [0, 64], sizes = [8, 32], strides = [1, 1]} : vector<8x128xf32> to vector<8x32xf32>
    %101 = vector.extract_strided_slice %96 {offsets = [0, 96], sizes = [8, 32], strides = [1, 1]} : vector<8x128xf32> to vector<8x32xf32>
    %102 = arith.mulf %99, %85 : vector<8x32xf32>
    %103 = arith.mulf %98, %100 : vector<8x32xf32>
    %104 = arith.addf %102, %103 : vector<8x32xf32>
    %105 = math.tanh %104 : vector<8x32xf32>
    %106 = arith.mulf %101, %105 : vector<8x32xf32>
    %107 = vector.extract_strided_slice %106 {offsets = [0, 0], sizes = [8, 16], strides = [1, 1]} : vector<8x32xf32> to vector<8x16xf32>
    %108 = vector.extract_strided_slice %106 {offsets = [0, 16], sizes = [8, 16], strides = [1, 1]} : vector<8x32xf32> to vector<8x16xf32>
    %cst_13 = arith.constant dense<0.000000e+00> : vector<8x128xf32>
    %109 = tpu.matmul %106, %68, %cst_13 {dimension_numbers = #tpu.dot_dimension_numbers<[1], [0], [0], [1], [0, 0, 1, 1], [], []>} : vector<8x32xf32>, vector<32x128xf32>, vector<8x128xf32> -> vector<8x128xf32>
    %110 = arith.addf %52, %109 : vector<8x128xf32>
    %111 = arith.negf %110 : vector<8x128xf32>
    %112 = math.exp %111 : vector<8x128xf32>
    %cst_14 = arith.constant 1.000000e+00 : f32
    %113 = vector.broadcast %cst_14 : f32 to vector<8x128xf32>
    %114 = arith.addf %113, %112 : vector<8x128xf32>
    %115 = arith.divf %113, %114 : vector<8x128xf32>
    %116 = math.tanh %110 : vector<8x128xf32>
    %117 = vector.extract_strided_slice %115 {offsets = [0, 0], sizes = [8, 32], strides = [1, 1]} : vector<8x128xf32> to vector<8x32xf32>
    %118 = vector.extract_strided_slice %115 {offsets = [0, 32], sizes = [8, 32], strides = [1, 1]} : vector<8x128xf32> to vector<8x32xf32>
    %119 = vector.extract_strided_slice %116 {offsets = [0, 64], sizes = [8, 32], strides = [1, 1]} : vector<8x128xf32> to vector<8x32xf32>
    %120 = vector.extract_strided_slice %115 {offsets = [0, 96], sizes = [8, 32], strides = [1, 1]} : vector<8x128xf32> to vector<8x32xf32>
    %121 = arith.mulf %118, %104 : vector<8x32xf32>
    %122 = arith.mulf %117, %119 : vector<8x32xf32>
    %123 = arith.addf %121, %122 : vector<8x32xf32>
    %124 = math.tanh %123 : vector<8x32xf32>
    %125 = arith.mulf %120, %124 : vector<8x32xf32>
    %126 = vector.extract_strided_slice %125 {offsets = [0, 0], sizes = [8, 16], strides = [1, 1]} : vector<8x32xf32> to vector<8x16xf32>
    %127 = vector.extract_strided_slice %125 {offsets = [0, 16], sizes = [8, 16], strides = [1, 1]} : vector<8x32xf32> to vector<8x16xf32>
    %cst_15 = arith.constant dense<0.000000e+00> : vector<8x128xf32>
    %128 = tpu.matmul %125, %68, %cst_15 {dimension_numbers = #tpu.dot_dimension_numbers<[1], [0], [0], [1], [0, 0, 1, 1], [], []>} : vector<8x32xf32>, vector<32x128xf32>, vector<8x128xf32> -> vector<8x128xf32>
    %129 = arith.addf %57, %128 : vector<8x128xf32>
    %130 = arith.negf %129 : vector<8x128xf32>
    %131 = math.exp %130 : vector<8x128xf32>
    %cst_16 = arith.constant 1.000000e+00 : f32
    %132 = vector.broadcast %cst_16 : f32 to vector<8x128xf32>
    %133 = arith.addf %132, %131 : vector<8x128xf32>
    %134 = arith.divf %132, %133 : vector<8x128xf32>
    %135 = math.tanh %129 : vector<8x128xf32>
    %136 = vector.extract_strided_slice %134 {offsets = [0, 0], sizes = [8, 32], strides = [1, 1]} : vector<8x128xf32> to vector<8x32xf32>
    %137 = vector.extract_strided_slice %134 {offsets = [0, 32], sizes = [8, 32], strides = [1, 1]} : vector<8x128xf32> to vector<8x32xf32>
    %138 = vector.extract_strided_slice %135 {offsets = [0, 64], sizes = [8, 32], strides = [1, 1]} : vector<8x128xf32> to vector<8x32xf32>
    %139 = vector.extract_strided_slice %134 {offsets = [0, 96], sizes = [8, 32], strides = [1, 1]} : vector<8x128xf32> to vector<8x32xf32>
    %140 = arith.mulf %137, %123 : vector<8x32xf32>
    %141 = arith.mulf %136, %138 : vector<8x32xf32>
    %142 = arith.addf %140, %141 : vector<8x32xf32>
    %143 = math.tanh %142 : vector<8x32xf32>
    %144 = arith.mulf %139, %143 : vector<8x32xf32>
    %145 = vector.extract_strided_slice %144 {offsets = [0, 0], sizes = [8, 16], strides = [1, 1]} : vector<8x32xf32> to vector<8x16xf32>
    %146 = vector.extract_strided_slice %144 {offsets = [0, 16], sizes = [8, 16], strides = [1, 1]} : vector<8x32xf32> to vector<8x16xf32>
    %cst_17 = arith.constant dense<0.000000e+00> : vector<8x128xf32>
    %147 = tpu.matmul %144, %68, %cst_17 {dimension_numbers = #tpu.dot_dimension_numbers<[1], [0], [0], [1], [0, 0, 1, 1], [], []>} : vector<8x32xf32>, vector<32x128xf32>, vector<8x128xf32> -> vector<8x128xf32>
    %148 = arith.addf %62, %147 : vector<8x128xf32>
    %149 = arith.negf %148 : vector<8x128xf32>
    %150 = math.exp %149 : vector<8x128xf32>
    %cst_18 = arith.constant 1.000000e+00 : f32
    %151 = vector.broadcast %cst_18 : f32 to vector<8x128xf32>
    %152 = arith.addf %151, %150 : vector<8x128xf32>
    %153 = arith.divf %151, %152 : vector<8x128xf32>
    %154 = math.tanh %148 : vector<8x128xf32>
    %155 = vector.extract_strided_slice %153 {offsets = [0, 0], sizes = [8, 32], strides = [1, 1]} : vector<8x128xf32> to vector<8x32xf32>
    %156 = vector.extract_strided_slice %153 {offsets = [0, 32], sizes = [8, 32], strides = [1, 1]} : vector<8x128xf32> to vector<8x32xf32>
    %157 = vector.extract_strided_slice %154 {offsets = [0, 64], sizes = [8, 32], strides = [1, 1]} : vector<8x128xf32> to vector<8x32xf32>
    %158 = vector.extract_strided_slice %153 {offsets = [0, 96], sizes = [8, 32], strides = [1, 1]} : vector<8x128xf32> to vector<8x32xf32>
    %159 = arith.mulf %156, %142 : vector<8x32xf32>
    %160 = arith.mulf %155, %157 : vector<8x32xf32>
    %161 = arith.addf %159, %160 : vector<8x32xf32>
    %162 = math.tanh %161 : vector<8x32xf32>
    %163 = arith.mulf %158, %162 : vector<8x32xf32>
    %164 = vector.extract_strided_slice %163 {offsets = [0, 0], sizes = [8, 16], strides = [1, 1]} : vector<8x32xf32> to vector<8x16xf32>
    %165 = vector.extract_strided_slice %163 {offsets = [0, 16], sizes = [8, 16], strides = [1, 1]} : vector<8x32xf32> to vector<8x16xf32>
    %cst_19 = arith.constant dense<0.000000e+00> : vector<8x128xf32>
    %166 = tpu.matmul %163, %68, %cst_19 {dimension_numbers = #tpu.dot_dimension_numbers<[1], [0], [0], [1], [0, 0, 1, 1], [], []>} : vector<8x32xf32>, vector<32x128xf32>, vector<8x128xf32> -> vector<8x128xf32>
    %167 = arith.addf %67, %166 : vector<8x128xf32>
    %168 = arith.negf %167 : vector<8x128xf32>
    %169 = math.exp %168 : vector<8x128xf32>
    %cst_20 = arith.constant 1.000000e+00 : f32
    %170 = vector.broadcast %cst_20 : f32 to vector<8x128xf32>
    %171 = arith.addf %170, %169 : vector<8x128xf32>
    %172 = arith.divf %170, %171 : vector<8x128xf32>
    %173 = math.tanh %167 : vector<8x128xf32>
    %174 = vector.extract_strided_slice %172 {offsets = [0, 0], sizes = [8, 32], strides = [1, 1]} : vector<8x128xf32> to vector<8x32xf32>
    %175 = vector.extract_strided_slice %172 {offsets = [0, 32], sizes = [8, 32], strides = [1, 1]} : vector<8x128xf32> to vector<8x32xf32>
    %176 = vector.extract_strided_slice %173 {offsets = [0, 64], sizes = [8, 32], strides = [1, 1]} : vector<8x128xf32> to vector<8x32xf32>
    %177 = vector.extract_strided_slice %172 {offsets = [0, 96], sizes = [8, 32], strides = [1, 1]} : vector<8x128xf32> to vector<8x32xf32>
    %178 = arith.mulf %175, %161 : vector<8x32xf32>
    %179 = arith.mulf %174, %176 : vector<8x32xf32>
    %180 = arith.addf %178, %179 : vector<8x32xf32>
    %181 = math.tanh %180 : vector<8x32xf32>
    %182 = arith.mulf %177, %181 : vector<8x32xf32>
    %183 = vector.extract_strided_slice %182 {offsets = [0, 0], sizes = [8, 16], strides = [1, 1]} : vector<8x32xf32> to vector<8x16xf32>
    %184 = vector.extract_strided_slice %182 {offsets = [0, 16], sizes = [8, 16], strides = [1, 1]} : vector<8x32xf32> to vector<8x16xf32>
    %185 = tpu.concatenate %88, %184 in 1 : vector<8x16xf32>, vector<8x16xf32> -> vector<8x32xf32>
    %186 = tpu.concatenate %107, %165 in 1 : vector<8x16xf32>, vector<8x16xf32> -> vector<8x32xf32>
    %187 = tpu.concatenate %126, %146 in 1 : vector<8x16xf32>, vector<8x16xf32> -> vector<8x32xf32>
    %188 = tpu.concatenate %145, %127 in 1 : vector<8x16xf32>, vector<8x16xf32> -> vector<8x32xf32>
    %189 = tpu.concatenate %164, %108 in 1 : vector<8x16xf32>, vector<8x16xf32> -> vector<8x32xf32>
    %190 = tpu.concatenate %183, %89 in 1 : vector<8x16xf32>, vector<8x16xf32> -> vector<8x32xf32>
    %c448 = arith.constant 448 : index
    %c0_21 = arith.constant 0 : index
    %191 = vector.load %arg3[%c448, %c0_21] : memref<520x128xf32, #tpu.memory_space<vmem>>, vector<32x128xf32>
    %c514 = arith.constant 514 : index
    %c0_22 = arith.constant 0 : index
    %192 = vector.load %arg3[%c514, %c0_22] : memref<520x128xf32, #tpu.memory_space<vmem>>, vector<1x128xf32>
    %c515 = arith.constant 515 : index
    %c0_23 = arith.constant 0 : index
    %193 = vector.load %arg3[%c515, %c0_23] : memref<520x128xf32, #tpu.memory_space<vmem>>, vector<1x128xf32>
    %194 = tpu.concatenate %185, %186, %187, %188, %189, %190 in 0 : vector<8x32xf32>, vector<8x32xf32>, vector<8x32xf32>, vector<8x32xf32>, vector<8x32xf32>, vector<8x32xf32> -> vector<48x32xf32>
    %cst_24 = arith.constant dense<0.000000e+00> : vector<48x128xf32>
    %195 = tpu.matmul %194, %191, %cst_24 {dimension_numbers = #tpu.dot_dimension_numbers<[1], [0], [0], [1], [0, 0, 1, 1], [], []>} : vector<48x32xf32>, vector<32x128xf32>, vector<48x128xf32> -> vector<48x128xf32>
    %196 = vector.broadcast %192 : vector<1x128xf32> to vector<48x128xf32>
    %197 = arith.addf %195, %196 : vector<48x128xf32>
    %198 = math.tanh %197 : vector<48x128xf32>
    %199 = vector.broadcast %193 : vector<1x128xf32> to vector<48x128xf32>
    %200 = arith.mulf %199, %198 : vector<48x128xf32>
    %cst_25 = arith.constant dense<0.000000e+00> : vector<48xf32>
    %201 = vector.multi_reduction <add>, %200, %cst_25 [1] : vector<48x128xf32> to vector<48xf32>
    %202 = vector.shape_cast %201 : vector<48xf32> to vector<48x1xf32>
    %203 = vector.extract_strided_slice %202 {offsets = [0, 0], sizes = [8, 1], strides = [1, 1]} : vector<48x1xf32> to vector<8x1xf32>
    %204 = vector.extract_strided_slice %202 {offsets = [8, 0], sizes = [8, 1], strides = [1, 1]} : vector<48x1xf32> to vector<8x1xf32>
    %205 = vector.extract_strided_slice %202 {offsets = [16, 0], sizes = [8, 1], strides = [1, 1]} : vector<48x1xf32> to vector<8x1xf32>
    %206 = vector.extract_strided_slice %202 {offsets = [24, 0], sizes = [8, 1], strides = [1, 1]} : vector<48x1xf32> to vector<8x1xf32>
    %207 = vector.extract_strided_slice %202 {offsets = [32, 0], sizes = [8, 1], strides = [1, 1]} : vector<48x1xf32> to vector<8x1xf32>
    %208 = vector.extract_strided_slice %202 {offsets = [40, 0], sizes = [8, 1], strides = [1, 1]} : vector<48x1xf32> to vector<8x1xf32>
    %209 = arith.maximumf %203, %204 : vector<8x1xf32>
    %210 = arith.maximumf %209, %205 : vector<8x1xf32>
    %211 = arith.maximumf %210, %206 : vector<8x1xf32>
    %212 = arith.maximumf %211, %207 : vector<8x1xf32>
    %213 = arith.maximumf %212, %208 : vector<8x1xf32>
    %214 = arith.subf %203, %213 : vector<8x1xf32>
    %215 = math.exp %214 : vector<8x1xf32>
    %216 = arith.subf %204, %213 : vector<8x1xf32>
    %217 = math.exp %216 : vector<8x1xf32>
    %218 = arith.subf %205, %213 : vector<8x1xf32>
    %219 = math.exp %218 : vector<8x1xf32>
    %220 = arith.subf %206, %213 : vector<8x1xf32>
    %221 = math.exp %220 : vector<8x1xf32>
    %222 = arith.subf %207, %213 : vector<8x1xf32>
    %223 = math.exp %222 : vector<8x1xf32>
    %224 = arith.subf %208, %213 : vector<8x1xf32>
    %225 = math.exp %224 : vector<8x1xf32>
    %226 = arith.addf %215, %217 : vector<8x1xf32>
    %227 = arith.addf %226, %219 : vector<8x1xf32>
    %228 = arith.addf %227, %221 : vector<8x1xf32>
    %229 = arith.addf %228, %223 : vector<8x1xf32>
    %230 = arith.addf %229, %225 : vector<8x1xf32>
    %231 = tpu.reciprocal %230 {approx = true} : vector<8x1xf32> -> vector<8x1xf32>
    %232 = arith.mulf %215, %231 : vector<8x1xf32>
    %233 = vector.broadcast %232 : vector<8x1xf32> to vector<8x32xf32>
    %234 = arith.mulf %233, %185 : vector<8x32xf32>
    %235 = arith.mulf %217, %231 : vector<8x1xf32>
    %236 = vector.broadcast %235 : vector<8x1xf32> to vector<8x32xf32>
    %237 = arith.mulf %236, %186 : vector<8x32xf32>
    %238 = arith.addf %234, %237 : vector<8x32xf32>
    %239 = arith.mulf %219, %231 : vector<8x1xf32>
    %240 = vector.broadcast %239 : vector<8x1xf32> to vector<8x32xf32>
    %241 = arith.mulf %240, %187 : vector<8x32xf32>
    %242 = arith.addf %238, %241 : vector<8x32xf32>
    %243 = arith.mulf %221, %231 : vector<8x1xf32>
    %244 = vector.broadcast %243 : vector<8x1xf32> to vector<8x32xf32>
    %245 = arith.mulf %244, %188 : vector<8x32xf32>
    %246 = arith.addf %242, %245 : vector<8x32xf32>
    %247 = arith.mulf %223, %231 : vector<8x1xf32>
    %248 = vector.broadcast %247 : vector<8x1xf32> to vector<8x32xf32>
    %249 = arith.mulf %248, %189 : vector<8x32xf32>
    %250 = arith.addf %246, %249 : vector<8x32xf32>
    %251 = arith.mulf %225, %231 : vector<8x1xf32>
    %252 = vector.broadcast %251 : vector<8x1xf32> to vector<8x32xf32>
    %253 = arith.mulf %252, %190 : vector<8x32xf32>
    %254 = arith.addf %250, %253 : vector<8x32xf32>
    %c0_26 = arith.constant 0 : index
    %c0_27 = arith.constant 0 : index
    %255 = vector.load %arg1[%c0_26, %c0_27] : memref<8x1xi32, #tpu.memory_space<vmem>>, vector<8x1xi32>
    %256 = tpu.iota {dimensions = array<i32: 1>} : vector<8x104xi32>
    %257 = vector.broadcast %255 : vector<8x1xi32> to vector<8x104xi32>
    %258 = arith.cmpi eq, %257, %256 : vector<8x104xi32>
    %259 = arith.extui %258 : vector<8x104xi1> to vector<8x104xi32>
    %260 = arith.sitofp %259 : vector<8x104xi32> to vector<8x104xf32>
    %c112 = arith.constant 112 : index
    %c0_28 = arith.constant 0 : index
    %261 = vector.load %arg3[%c112, %c0_28] : memref<520x128xf32, #tpu.memory_space<vmem>>, vector<104x128xf32>
    %cst_29 = arith.constant dense<0.000000e+00> : vector<8x128xf32>
    %262 = tpu.matmul %260, %261, %cst_29 {dimension_numbers = #tpu.dot_dimension_numbers<[1], [0], [0], [1], [0, 0, 1, 1], [], []>} : vector<8x104xf32>, vector<104x128xf32>, vector<8x128xf32> -> vector<8x128xf32>
    %c384 = arith.constant 384 : index
    %c0_30 = arith.constant 0 : index
    %263 = vector.load %arg3[%c384, %c0_30] : memref<520x128xf32, #tpu.memory_space<vmem>>, vector<32x128xf32>
    %cst_31 = arith.constant dense<0.000000e+00> : vector<8x128xf32>
    %264 = tpu.matmul %254, %263, %cst_31 {dimension_numbers = #tpu.dot_dimension_numbers<[1], [0], [0], [1], [0, 0, 1, 1], [], []>} : vector<8x32xf32>, vector<32x128xf32>, vector<8x128xf32> -> vector<8x128xf32>
    %265 = arith.addf %262, %264 : vector<8x128xf32>
    %c216 = arith.constant 216 : index
    %c0_32 = arith.constant 0 : index
    %266 = vector.load %arg3[%c216, %c0_32] : memref<520x128xf32, #tpu.memory_space<vmem>>, vector<104x128xf32>
    %cst_33 = arith.constant dense<0.000000e+00> : vector<8x128xf32>
    %267 = tpu.matmul %260, %266, %cst_33 {dimension_numbers = #tpu.dot_dimension_numbers<[1], [0], [0], [1], [0, 0, 1, 1], [], []>} : vector<8x104xf32>, vector<104x128xf32>, vector<8x128xf32> -> vector<8x128xf32>
    %c416 = arith.constant 416 : index
    %c0_34 = arith.constant 0 : index
    %268 = vector.load %arg3[%c416, %c0_34] : memref<520x128xf32, #tpu.memory_space<vmem>>, vector<32x128xf32>
    %cst_35 = arith.constant dense<0.000000e+00> : vector<8x128xf32>
    %269 = tpu.matmul %254, %268, %cst_35 {dimension_numbers = #tpu.dot_dimension_numbers<[1], [0], [0], [1], [0, 0, 1, 1], [], []>} : vector<8x32xf32>, vector<32x128xf32>, vector<8x128xf32> -> vector<8x128xf32>
    %270 = arith.addf %267, %269 : vector<8x128xf32>
    %c513 = arith.constant 513 : index
    %c0_36 = arith.constant 0 : index
    %271 = vector.load %arg3[%c513, %c0_36] : memref<520x128xf32, #tpu.memory_space<vmem>>, vector<1x128xf32>
    %272 = vector.extract_strided_slice %265 {offsets = [0, 0], sizes = [1, 128], strides = [1, 1]} : vector<8x128xf32> to vector<1x128xf32>
    %273 = vector.extract_strided_slice %270 {offsets = [7, 0], sizes = [1, 128], strides = [1, 1]} : vector<8x128xf32> to vector<1x128xf32>
    %274 = arith.addf %272, %273 : vector<1x128xf32>
    %275 = arith.addf %274, %271 : vector<1x128xf32>
    %276 = vector.extract_strided_slice %265 {offsets = [1, 0], sizes = [1, 128], strides = [1, 1]} : vector<8x128xf32> to vector<1x128xf32>
    %277 = vector.extract_strided_slice %270 {offsets = [6, 0], sizes = [1, 128], strides = [1, 1]} : vector<8x128xf32> to vector<1x128xf32>
    %278 = arith.addf %276, %277 : vector<1x128xf32>
    %279 = arith.addf %278, %271 : vector<1x128xf32>
    %280 = vector.extract_strided_slice %265 {offsets = [2, 0], sizes = [1, 128], strides = [1, 1]} : vector<8x128xf32> to vector<1x128xf32>
    %281 = vector.extract_strided_slice %270 {offsets = [5, 0], sizes = [1, 128], strides = [1, 1]} : vector<8x128xf32> to vector<1x128xf32>
    %282 = arith.addf %280, %281 : vector<1x128xf32>
    %283 = arith.addf %282, %271 : vector<1x128xf32>
    %284 = vector.extract_strided_slice %265 {offsets = [3, 0], sizes = [1, 128], strides = [1, 1]} : vector<8x128xf32> to vector<1x128xf32>
    %285 = vector.extract_strided_slice %270 {offsets = [4, 0], sizes = [1, 128], strides = [1, 1]} : vector<8x128xf32> to vector<1x128xf32>
    %286 = arith.addf %284, %285 : vector<1x128xf32>
    %287 = arith.addf %286, %271 : vector<1x128xf32>
    %288 = vector.extract_strided_slice %265 {offsets = [4, 0], sizes = [1, 128], strides = [1, 1]} : vector<8x128xf32> to vector<1x128xf32>
    %289 = vector.extract_strided_slice %270 {offsets = [3, 0], sizes = [1, 128], strides = [1, 1]} : vector<8x128xf32> to vector<1x128xf32>
    %290 = arith.addf %288, %289 : vector<1x128xf32>
    %291 = arith.addf %290, %271 : vector<1x128xf32>
    %292 = vector.extract_strided_slice %265 {offsets = [5, 0], sizes = [1, 128], strides = [1, 1]} : vector<8x128xf32> to vector<1x128xf32>
    %293 = vector.extract_strided_slice %270 {offsets = [2, 0], sizes = [1, 128], strides = [1, 1]} : vector<8x128xf32> to vector<1x128xf32>
    %294 = arith.addf %292, %293 : vector<1x128xf32>
    %295 = arith.addf %294, %271 : vector<1x128xf32>
    %296 = vector.extract_strided_slice %265 {offsets = [6, 0], sizes = [1, 128], strides = [1, 1]} : vector<8x128xf32> to vector<1x128xf32>
    %297 = vector.extract_strided_slice %270 {offsets = [1, 0], sizes = [1, 128], strides = [1, 1]} : vector<8x128xf32> to vector<1x128xf32>
    %298 = arith.addf %296, %297 : vector<1x128xf32>
    %299 = arith.addf %298, %271 : vector<1x128xf32>
    %300 = vector.extract_strided_slice %265 {offsets = [7, 0], sizes = [1, 128], strides = [1, 1]} : vector<8x128xf32> to vector<1x128xf32>
    %301 = vector.extract_strided_slice %270 {offsets = [0, 0], sizes = [1, 128], strides = [1, 1]} : vector<8x128xf32> to vector<1x128xf32>
    %302 = arith.addf %300, %301 : vector<1x128xf32>
    %303 = arith.addf %302, %271 : vector<1x128xf32>
    %c352 = arith.constant 352 : index
    %c0_37 = arith.constant 0 : index
    %304 = vector.load %arg3[%c352, %c0_37] : memref<520x128xf32, #tpu.memory_space<vmem>>, vector<32x128xf32>
    %cst_38 = arith.constant 0.000000e+00 : f32
    %305 = vector.broadcast %cst_38 : f32 to vector<1x32xf32>
    %cst_39 = arith.constant 0.000000e+00 : f32
    %306 = vector.broadcast %cst_39 : f32 to vector<1x32xf32>
    %cst_40 = arith.constant dense<0.000000e+00> : vector<1x128xf32>
    %307 = tpu.matmul %305, %304, %cst_40 {dimension_numbers = #tpu.dot_dimension_numbers<[1], [0], [0], [1], [0, 0, 1, 1], [], []>} : vector<1x32xf32>, vector<32x128xf32>, vector<1x128xf32> -> vector<1x128xf32>
    %308 = arith.addf %275, %307 : vector<1x128xf32>
    %309 = arith.negf %308 : vector<1x128xf32>
    %310 = math.exp %309 : vector<1x128xf32>
    %cst_41 = arith.constant 1.000000e+00 : f32
    %311 = vector.broadcast %cst_41 : f32 to vector<1x128xf32>
    %312 = arith.addf %311, %310 : vector<1x128xf32>
    %313 = arith.divf %311, %312 : vector<1x128xf32>
    %314 = math.tanh %308 : vector<1x128xf32>
    %315 = vector.extract_strided_slice %313 {offsets = [0, 0], sizes = [1, 32], strides = [1, 1]} : vector<1x128xf32> to vector<1x32xf32>
    %316 = vector.extract_strided_slice %313 {offsets = [0, 32], sizes = [1, 32], strides = [1, 1]} : vector<1x128xf32> to vector<1x32xf32>
    %317 = vector.extract_strided_slice %314 {offsets = [0, 64], sizes = [1, 32], strides = [1, 1]} : vector<1x128xf32> to vector<1x32xf32>
    %318 = vector.extract_strided_slice %313 {offsets = [0, 96], sizes = [1, 32], strides = [1, 1]} : vector<1x128xf32> to vector<1x32xf32>
    %319 = arith.mulf %316, %306 : vector<1x32xf32>
    %320 = arith.mulf %315, %317 : vector<1x32xf32>
    %321 = arith.addf %319, %320 : vector<1x32xf32>
    %322 = math.tanh %321 : vector<1x32xf32>
    %323 = arith.mulf %318, %322 : vector<1x32xf32>
    %324 = vector.extract_strided_slice %323 {offsets = [0, 0], sizes = [1, 16], strides = [1, 1]} : vector<1x32xf32> to vector<1x16xf32>
    %325 = vector.extract_strided_slice %323 {offsets = [0, 16], sizes = [1, 16], strides = [1, 1]} : vector<1x32xf32> to vector<1x16xf32>
    %cst_42 = arith.constant dense<0.000000e+00> : vector<1x128xf32>
    %326 = tpu.matmul %323, %304, %cst_42 {dimension_numbers = #tpu.dot_dimension_numbers<[1], [0], [0], [1], [0, 0, 1, 1], [], []>} : vector<1x32xf32>, vector<32x128xf32>, vector<1x128xf32> -> vector<1x128xf32>
    %327 = arith.addf %279, %326 : vector<1x128xf32>
    %328 = arith.negf %327 : vector<1x128xf32>
    %329 = math.exp %328 : vector<1x128xf32>
    %cst_43 = arith.constant 1.000000e+00 : f32
    %330 = vector.broadcast %cst_43 : f32 to vector<1x128xf32>
    %331 = arith.addf %330, %329 : vector<1x128xf32>
    %332 = arith.divf %330, %331 : vector<1x128xf32>
    %333 = math.tanh %327 : vector<1x128xf32>
    %334 = vector.extract_strided_slice %332 {offsets = [0, 0], sizes = [1, 32], strides = [1, 1]} : vector<1x128xf32> to vector<1x32xf32>
    %335 = vector.extract_strided_slice %332 {offsets = [0, 32], sizes = [1, 32], strides = [1, 1]} : vector<1x128xf32> to vector<1x32xf32>
    %336 = vector.extract_strided_slice %333 {offsets = [0, 64], sizes = [1, 32], strides = [1, 1]} : vector<1x128xf32> to vector<1x32xf32>
    %337 = vector.extract_strided_slice %332 {offsets = [0, 96], sizes = [1, 32], strides = [1, 1]} : vector<1x128xf32> to vector<1x32xf32>
    %338 = arith.mulf %335, %321 : vector<1x32xf32>
    %339 = arith.mulf %334, %336 : vector<1x32xf32>
    %340 = arith.addf %338, %339 : vector<1x32xf32>
    %341 = math.tanh %340 : vector<1x32xf32>
    %342 = arith.mulf %337, %341 : vector<1x32xf32>
    %343 = vector.extract_strided_slice %342 {offsets = [0, 0], sizes = [1, 16], strides = [1, 1]} : vector<1x32xf32> to vector<1x16xf32>
    %344 = vector.extract_strided_slice %342 {offsets = [0, 16], sizes = [1, 16], strides = [1, 1]} : vector<1x32xf32> to vector<1x16xf32>
    %cst_44 = arith.constant dense<0.000000e+00> : vector<1x128xf32>
    %345 = tpu.matmul %342, %304, %cst_44 {dimension_numbers = #tpu.dot_dimension_numbers<[1], [0], [0], [1], [0, 0, 1, 1], [], []>} : vector<1x32xf32>, vector<32x128xf32>, vector<1x128xf32> -> vector<1x128xf32>
    %346 = arith.addf %283, %345 : vector<1x128xf32>
    %347 = arith.negf %346 : vector<1x128xf32>
    %348 = math.exp %347 : vector<1x128xf32>
    %cst_45 = arith.constant 1.000000e+00 : f32
    %349 = vector.broadcast %cst_45 : f32 to vector<1x128xf32>
    %350 = arith.addf %349, %348 : vector<1x128xf32>
    %351 = arith.divf %349, %350 : vector<1x128xf32>
    %352 = math.tanh %346 : vector<1x128xf32>
    %353 = vector.extract_strided_slice %351 {offsets = [0, 0], sizes = [1, 32], strides = [1, 1]} : vector<1x128xf32> to vector<1x32xf32>
    %354 = vector.extract_strided_slice %351 {offsets = [0, 32], sizes = [1, 32], strides = [1, 1]} : vector<1x128xf32> to vector<1x32xf32>
    %355 = vector.extract_strided_slice %352 {offsets = [0, 64], sizes = [1, 32], strides = [1, 1]} : vector<1x128xf32> to vector<1x32xf32>
    %356 = vector.extract_strided_slice %351 {offsets = [0, 96], sizes = [1, 32], strides = [1, 1]} : vector<1x128xf32> to vector<1x32xf32>
    %357 = arith.mulf %354, %340 : vector<1x32xf32>
    %358 = arith.mulf %353, %355 : vector<1x32xf32>
    %359 = arith.addf %357, %358 : vector<1x32xf32>
    %360 = math.tanh %359 : vector<1x32xf32>
    %361 = arith.mulf %356, %360 : vector<1x32xf32>
    %362 = vector.extract_strided_slice %361 {offsets = [0, 0], sizes = [1, 16], strides = [1, 1]} : vector<1x32xf32> to vector<1x16xf32>
    %363 = vector.extract_strided_slice %361 {offsets = [0, 16], sizes = [1, 16], strides = [1, 1]} : vector<1x32xf32> to vector<1x16xf32>
    %cst_46 = arith.constant dense<0.000000e+00> : vector<1x128xf32>
    %364 = tpu.matmul %361, %304, %cst_46 {dimension_numbers = #tpu.dot_dimension_numbers<[1], [0], [0], [1], [0, 0, 1, 1], [], []>} : vector<1x32xf32>, vector<32x128xf32>, vector<1x128xf32> -> vector<1x128xf32>
    %365 = arith.addf %287, %364 : vector<1x128xf32>
    %366 = arith.negf %365 : vector<1x128xf32>
    %367 = math.exp %366 : vector<1x128xf32>
    %cst_47 = arith.constant 1.000000e+00 : f32
    %368 = vector.broadcast %cst_47 : f32 to vector<1x128xf32>
    %369 = arith.addf %368, %367 : vector<1x128xf32>
    %370 = arith.divf %368, %369 : vector<1x128xf32>
    %371 = math.tanh %365 : vector<1x128xf32>
    %372 = vector.extract_strided_slice %370 {offsets = [0, 0], sizes = [1, 32], strides = [1, 1]} : vector<1x128xf32> to vector<1x32xf32>
    %373 = vector.extract_strided_slice %370 {offsets = [0, 32], sizes = [1, 32], strides = [1, 1]} : vector<1x128xf32> to vector<1x32xf32>
    %374 = vector.extract_strided_slice %371 {offsets = [0, 64], sizes = [1, 32], strides = [1, 1]} : vector<1x128xf32> to vector<1x32xf32>
    %375 = vector.extract_strided_slice %370 {offsets = [0, 96], sizes = [1, 32], strides = [1, 1]} : vector<1x128xf32> to vector<1x32xf32>
    %376 = arith.mulf %373, %359 : vector<1x32xf32>
    %377 = arith.mulf %372, %374 : vector<1x32xf32>
    %378 = arith.addf %376, %377 : vector<1x32xf32>
    %379 = math.tanh %378 : vector<1x32xf32>
    %380 = arith.mulf %375, %379 : vector<1x32xf32>
    %381 = vector.extract_strided_slice %380 {offsets = [0, 0], sizes = [1, 16], strides = [1, 1]} : vector<1x32xf32> to vector<1x16xf32>
    %382 = vector.extract_strided_slice %380 {offsets = [0, 16], sizes = [1, 16], strides = [1, 1]} : vector<1x32xf32> to vector<1x16xf32>
    %cst_48 = arith.constant dense<0.000000e+00> : vector<1x128xf32>
    %383 = tpu.matmul %380, %304, %cst_48 {dimension_numbers = #tpu.dot_dimension_numbers<[1], [0], [0], [1], [0, 0, 1, 1], [], []>} : vector<1x32xf32>, vector<32x128xf32>, vector<1x128xf32> -> vector<1x128xf32>
    %384 = arith.addf %291, %383 : vector<1x128xf32>
    %385 = arith.negf %384 : vector<1x128xf32>
    %386 = math.exp %385 : vector<1x128xf32>
    %cst_49 = arith.constant 1.000000e+00 : f32
    %387 = vector.broadcast %cst_49 : f32 to vector<1x128xf32>
    %388 = arith.addf %387, %386 : vector<1x128xf32>
    %389 = arith.divf %387, %388 : vector<1x128xf32>
    %390 = math.tanh %384 : vector<1x128xf32>
    %391 = vector.extract_strided_slice %389 {offsets = [0, 0], sizes = [1, 32], strides = [1, 1]} : vector<1x128xf32> to vector<1x32xf32>
    %392 = vector.extract_strided_slice %389 {offsets = [0, 32], sizes = [1, 32], strides = [1, 1]} : vector<1x128xf32> to vector<1x32xf32>
    %393 = vector.extract_strided_slice %390 {offsets = [0, 64], sizes = [1, 32], strides = [1, 1]} : vector<1x128xf32> to vector<1x32xf32>
    %394 = vector.extract_strided_slice %389 {offsets = [0, 96], sizes = [1, 32], strides = [1, 1]} : vector<1x128xf32> to vector<1x32xf32>
    %395 = arith.mulf %392, %378 : vector<1x32xf32>
    %396 = arith.mulf %391, %393 : vector<1x32xf32>
    %397 = arith.addf %395, %396 : vector<1x32xf32>
    %398 = math.tanh %397 : vector<1x32xf32>
    %399 = arith.mulf %394, %398 : vector<1x32xf32>
    %400 = vector.extract_strided_slice %399 {offsets = [0, 0], sizes = [1, 16], strides = [1, 1]} : vector<1x32xf32> to vector<1x16xf32>
    %401 = vector.extract_strided_slice %399 {offsets = [0, 16], sizes = [1, 16], strides = [1, 1]} : vector<1x32xf32> to vector<1x16xf32>
    %cst_50 = arith.constant dense<0.000000e+00> : vector<1x128xf32>
    %402 = tpu.matmul %399, %304, %cst_50 {dimension_numbers = #tpu.dot_dimension_numbers<[1], [0], [0], [1], [0, 0, 1, 1], [], []>} : vector<1x32xf32>, vector<32x128xf32>, vector<1x128xf32> -> vector<1x128xf32>
    %403 = arith.addf %295, %402 : vector<1x128xf32>
    %404 = arith.negf %403 : vector<1x128xf32>
    %405 = math.exp %404 : vector<1x128xf32>
    %cst_51 = arith.constant 1.000000e+00 : f32
    %406 = vector.broadcast %cst_51 : f32 to vector<1x128xf32>
    %407 = arith.addf %406, %405 : vector<1x128xf32>
    %408 = arith.divf %406, %407 : vector<1x128xf32>
    %409 = math.tanh %403 : vector<1x128xf32>
    %410 = vector.extract_strided_slice %408 {offsets = [0, 0], sizes = [1, 32], strides = [1, 1]} : vector<1x128xf32> to vector<1x32xf32>
    %411 = vector.extract_strided_slice %408 {offsets = [0, 32], sizes = [1, 32], strides = [1, 1]} : vector<1x128xf32> to vector<1x32xf32>
    %412 = vector.extract_strided_slice %409 {offsets = [0, 64], sizes = [1, 32], strides = [1, 1]} : vector<1x128xf32> to vector<1x32xf32>
    %413 = vector.extract_strided_slice %408 {offsets = [0, 96], sizes = [1, 32], strides = [1, 1]} : vector<1x128xf32> to vector<1x32xf32>
    %414 = arith.mulf %411, %397 : vector<1x32xf32>
    %415 = arith.mulf %410, %412 : vector<1x32xf32>
    %416 = arith.addf %414, %415 : vector<1x32xf32>
    %417 = math.tanh %416 : vector<1x32xf32>
    %418 = arith.mulf %413, %417 : vector<1x32xf32>
    %419 = vector.extract_strided_slice %418 {offsets = [0, 0], sizes = [1, 16], strides = [1, 1]} : vector<1x32xf32> to vector<1x16xf32>
    %420 = vector.extract_strided_slice %418 {offsets = [0, 16], sizes = [1, 16], strides = [1, 1]} : vector<1x32xf32> to vector<1x16xf32>
    %cst_52 = arith.constant dense<0.000000e+00> : vector<1x128xf32>
    %421 = tpu.matmul %418, %304, %cst_52 {dimension_numbers = #tpu.dot_dimension_numbers<[1], [0], [0], [1], [0, 0, 1, 1], [], []>} : vector<1x32xf32>, vector<32x128xf32>, vector<1x128xf32> -> vector<1x128xf32>
    %422 = arith.addf %299, %421 : vector<1x128xf32>
    %423 = arith.negf %422 : vector<1x128xf32>
    %424 = math.exp %423 : vector<1x128xf32>
    %cst_53 = arith.constant 1.000000e+00 : f32
    %425 = vector.broadcast %cst_53 : f32 to vector<1x128xf32>
    %426 = arith.addf %425, %424 : vector<1x128xf32>
    %427 = arith.divf %425, %426 : vector<1x128xf32>
    %428 = math.tanh %422 : vector<1x128xf32>
    %429 = vector.extract_strided_slice %427 {offsets = [0, 0], sizes = [1, 32], strides = [1, 1]} : vector<1x128xf32> to vector<1x32xf32>
    %430 = vector.extract_strided_slice %427 {offsets = [0, 32], sizes = [1, 32], strides = [1, 1]} : vector<1x128xf32> to vector<1x32xf32>
    %431 = vector.extract_strided_slice %428 {offsets = [0, 64], sizes = [1, 32], strides = [1, 1]} : vector<1x128xf32> to vector<1x32xf32>
    %432 = vector.extract_strided_slice %427 {offsets = [0, 96], sizes = [1, 32], strides = [1, 1]} : vector<1x128xf32> to vector<1x32xf32>
    %433 = arith.mulf %430, %416 : vector<1x32xf32>
    %434 = arith.mulf %429, %431 : vector<1x32xf32>
    %435 = arith.addf %433, %434 : vector<1x32xf32>
    %436 = math.tanh %435 : vector<1x32xf32>
    %437 = arith.mulf %432, %436 : vector<1x32xf32>
    %438 = vector.extract_strided_slice %437 {offsets = [0, 0], sizes = [1, 16], strides = [1, 1]} : vector<1x32xf32> to vector<1x16xf32>
    %439 = vector.extract_strided_slice %437 {offsets = [0, 16], sizes = [1, 16], strides = [1, 1]} : vector<1x32xf32> to vector<1x16xf32>
    %cst_54 = arith.constant dense<0.000000e+00> : vector<1x128xf32>
    %440 = tpu.matmul %437, %304, %cst_54 {dimension_numbers = #tpu.dot_dimension_numbers<[1], [0], [0], [1], [0, 0, 1, 1], [], []>} : vector<1x32xf32>, vector<32x128xf32>, vector<1x128xf32> -> vector<1x128xf32>
    %441 = arith.addf %303, %440 : vector<1x128xf32>
    %442 = arith.negf %441 : vector<1x128xf32>
    %443 = math.exp %442 : vector<1x128xf32>
    %cst_55 = arith.constant 1.000000e+00 : f32
    %444 = vector.broadcast %cst_55 : f32 to vector<1x128xf32>
    %445 = arith.addf %444, %443 : vector<1x128xf32>
    %446 = arith.divf %444, %445 : vector<1x128xf32>
    %447 = math.tanh %441 : vector<1x128xf32>
    %448 = vector.extract_strided_slice %446 {offsets = [0, 0], sizes = [1, 32], strides = [1, 1]} : vector<1x128xf32> to vector<1x32xf32>
    %449 = vector.extract_strided_slice %446 {offsets = [0, 32], sizes = [1, 32], strides = [1, 1]} : vector<1x128xf32> to vector<1x32xf32>
    %450 = vector.extract_strided_slice %447 {offsets = [0, 64], sizes = [1, 32], strides = [1, 1]} : vector<1x128xf32> to vector<1x32xf32>
    %451 = vector.extract_strided_slice %446 {offsets = [0, 96], sizes = [1, 32], strides = [1, 1]} : vector<1x128xf32> to vector<1x32xf32>
    %452 = arith.mulf %449, %435 : vector<1x32xf32>
    %453 = arith.mulf %448, %450 : vector<1x32xf32>
    %454 = arith.addf %452, %453 : vector<1x32xf32>
    %455 = math.tanh %454 : vector<1x32xf32>
    %456 = arith.mulf %451, %455 : vector<1x32xf32>
    %457 = vector.extract_strided_slice %456 {offsets = [0, 0], sizes = [1, 16], strides = [1, 1]} : vector<1x32xf32> to vector<1x16xf32>
    %458 = vector.extract_strided_slice %456 {offsets = [0, 16], sizes = [1, 16], strides = [1, 1]} : vector<1x32xf32> to vector<1x16xf32>
    %459 = tpu.concatenate %324, %458 in 1 : vector<1x16xf32>, vector<1x16xf32> -> vector<1x32xf32>
    %460 = tpu.concatenate %343, %439 in 1 : vector<1x16xf32>, vector<1x16xf32> -> vector<1x32xf32>
    %461 = tpu.concatenate %362, %420 in 1 : vector<1x16xf32>, vector<1x16xf32> -> vector<1x32xf32>
    %462 = tpu.concatenate %381, %401 in 1 : vector<1x16xf32>, vector<1x16xf32> -> vector<1x32xf32>
    %463 = tpu.concatenate %400, %382 in 1 : vector<1x16xf32>, vector<1x16xf32> -> vector<1x32xf32>
    %464 = tpu.concatenate %419, %363 in 1 : vector<1x16xf32>, vector<1x16xf32> -> vector<1x32xf32>
    %465 = tpu.concatenate %438, %344 in 1 : vector<1x16xf32>, vector<1x16xf32> -> vector<1x32xf32>
    %466 = tpu.concatenate %457, %325 in 1 : vector<1x16xf32>, vector<1x16xf32> -> vector<1x32xf32>
    %467 = tpu.concatenate %459, %460, %461, %462, %463, %464, %465, %466 in 0 : vector<1x32xf32>, vector<1x32xf32>, vector<1x32xf32>, vector<1x32xf32>, vector<1x32xf32>, vector<1x32xf32>, vector<1x32xf32>, vector<1x32xf32> -> vector<8x32xf32>
    %c480 = arith.constant 480 : index
    %c0_56 = arith.constant 0 : index
    %468 = vector.load %arg3[%c480, %c0_56] : memref<520x128xf32, #tpu.memory_space<vmem>>, vector<32x128xf32>
    %c516 = arith.constant 516 : index
    %c0_57 = arith.constant 0 : index
    %469 = vector.load %arg3[%c516, %c0_57] : memref<520x128xf32, #tpu.memory_space<vmem>>, vector<1x128xf32>
    %cst_58 = arith.constant dense<0.000000e+00> : vector<8x128xf32>
    %470 = tpu.matmul %467, %468, %cst_58 {dimension_numbers = #tpu.dot_dimension_numbers<[1], [0], [0], [1], [0, 0, 1, 1], [], []>} : vector<8x32xf32>, vector<32x128xf32>, vector<8x128xf32> -> vector<8x128xf32>
    %471 = vector.broadcast %469 : vector<1x128xf32> to vector<8x128xf32>
    %472 = arith.addf %470, %471 : vector<8x128xf32>
    %473 = vector.extract_strided_slice %472 {offsets = [0, 0], sizes = [8, 8], strides = [1, 1]} : vector<8x128xf32> to vector<8x8xf32>
    %cst_59 = arith.constant dense<0xFF800000> : vector<8xf32>
    %474 = vector.multi_reduction <maximumf>, %473, %cst_59 [1] : vector<8x8xf32> to vector<8xf32>
    %475 = vector.shape_cast %474 : vector<8xf32> to vector<8x1xf32>
    %476 = vector.broadcast %475 : vector<8x1xf32> to vector<8x8xf32>
    %477 = arith.subf %473, %476 : vector<8x8xf32>
    %478 = math.exp %477 : vector<8x8xf32>
    %cst_60 = arith.constant dense<0.000000e+00> : vector<8xf32>
    %479 = vector.multi_reduction <add>, %478, %cst_60 [1] : vector<8x8xf32> to vector<8xf32>
    %480 = vector.shape_cast %479 : vector<8xf32> to vector<8x1xf32>
    %481 = math.log %480 : vector<8x1xf32>
    %482 = vector.broadcast %481 : vector<8x1xf32> to vector<8x8xf32>
    %483 = arith.subf %477, %482 : vector<8x8xf32>
    %484 = vector.extract_strided_slice %472 {offsets = [0, 8], sizes = [8, 6], strides = [1, 1]} : vector<8x128xf32> to vector<8x6xf32>
    %cst_61 = arith.constant dense<0xFF800000> : vector<8xf32>
    %485 = vector.multi_reduction <maximumf>, %484, %cst_61 [1] : vector<8x6xf32> to vector<8xf32>
    %486 = vector.shape_cast %485 : vector<8xf32> to vector<8x1xf32>
    %487 = vector.broadcast %486 : vector<8x1xf32> to vector<8x6xf32>
    %488 = arith.subf %484, %487 : vector<8x6xf32>
    %489 = math.exp %488 : vector<8x6xf32>
    %cst_62 = arith.constant dense<0.000000e+00> : vector<8xf32>
    %490 = vector.multi_reduction <add>, %489, %cst_62 [1] : vector<8x6xf32> to vector<8xf32>
    %491 = vector.shape_cast %490 : vector<8xf32> to vector<8x1xf32>
    %492 = math.log %491 : vector<8x1xf32>
    %493 = vector.broadcast %492 : vector<8x1xf32> to vector<8x6xf32>
    %494 = arith.subf %488, %493 : vector<8x6xf32>
    %495 = tpu.concatenate %483, %494 in 1 : vector<8x8xf32>, vector<8x6xf32> -> vector<8x14xf32>
    %c0_63 = arith.constant 0 : index
    %c0_64 = arith.constant 0 : index
    %496 = vector.load %arg4[%c0_63, %c0_64] : memref<8x14xf32, #tpu.memory_space<vmem>>, vector<8x14xf32>
    tpu.vector_store %arg4[%c0_63, %c0_64], %495 {strides = array<i32>} : memref<8x14xf32, #tpu.memory_space<vmem>>, vector<8x14xf32>,
    return
  }
  func.func @transform_0(%arg0: i32) -> (i32, i32) {
    %c0_i32 = arith.constant 0 : i32
    %c0_i32_0 = arith.constant 0 : i32
    %c0_i32_1 = arith.constant 0 : i32
    return %c0_i32, %c0_i32_0 : i32, i32
  }
  func.func @transform_1(%arg0: i32) -> (i32, i32) {
    %c0_i32 = arith.constant 0 : i32
    %c0_i32_0 = arith.constant 0 : i32
    %c0_i32_1 = arith.constant 0 : i32
    return %c0_i32, %c0_i32_0 : i32, i32
  }
  func.func @transform_2(%arg0: i32) -> (i32, i32) {
    %c0_i32 = arith.constant 0 : i32
    %c0_i32_0 = arith.constant 0 : i32
    %c0_i32_1 = arith.constant 0 : i32
    return %c0_i32, %c0_i32_0 : i32, i32
  }
  func.func @transform_3(%arg0: i32) -> (i32, i32) {
    %c0_i32 = arith.constant 0 : i32
    %c0_i32_0 = arith.constant 0 : i32
    %c0_i32_1 = arith.constant 0 : i32
    return %c0_i32, %c0_i32_0 : i32, i32
  }
}

</mosaic_0001>

<llo_original>
// kernel: forward.1
$region0: #{forward.1}
  #allocation0 [shape = 'u32[]', space=smem, size = 0x4, offset = 0x4, fixed_abs, tag = 'smem constant byte address 0x4 - core index']
  #allocation1 [shape = 'u32[72,128]{1,0:T(1,128)}', space=vmem, size = 0x9000, scoped, tag = 'internal scratch']
  %s0 = inlined_call_operand.vmem [shape: s32[8,1], index: 0, kind: input, shape index: {}]
  %s1 = inlined_call_operand.vmem [shape: s32[8,6], index: 1, kind: input, shape index: {}]
  %s2 = inlined_call_operand.hbm [shape: f32[520,128], index: 2, kind: input, shape index: {}]
  %s3 = inlined_call_operand.vmem [shape: f32[8,14], index: 3, kind: output, shape index: {}]
  %s4 = sld [smem:[#allocation0]]
  $region26: #{forward.1} parent=0
    _
  %s6 = ssub.s32 1, %s4
  %s7 = scalar_select 0, %s6, %s4
  $region1: #{forward.1} parent=0
    #allocation2 [shape = 'u8[266240]{0}', space=vmem, size = 0x41000, scoped, tag = 'input window, operand 2, single buffered']
    #allocation3 [shape = 's32[1]{0}', space=sflag, size = 0x4, scoped, tag = 'scoped memory for forward.1']
    %8 = vsyncpa [#allocation3], 0
    // Predicated region
    $region2: #{forward.1} parent=1 // pred_check
      _
    $region3: #{forward.1} parent=1 // pred_check_branch
      %10 = sbr.rel (0) target = $region5
    $region4: #{forward.1} parent=1 // pred_region
      _
    $region5: #{forward.1} parent=1 // pred_fallthru
      _
    // Predicated region
    $region6: #{forward.1} parent=1 // pred_check
      _
    $region7: #{forward.1} parent=1 // pred_check_branch
      %12 = sbr.rel (0) target = $region9
    $region8: #{forward.1} parent=1 // pred_region
      _
    $region9: #{forward.1} parent=1 // pred_fallthru
      _
    // Predicated region
    $region10: #{forward.1} parent=1 // pred_check
      _
    $region11: #{forward.1} parent=1 // pred_check_branch
      %14 = sbr.rel (0) target = $region13
    $region12: #{forward.1} parent=1 // pred_region
      %16 = vsyncadd [#allocation3], 0
      %s17 = sshll.u32 %s2, 4
      %s18 = int_to_ptr.hbm [resolvable:$true] %s17
      %s19 = sshll.u32 [#allocation2], 4
      %s20 = int_to_ptr.vmem [resolvable:$true] %s19
      %25 = dma.hbm_to_vmem [thread:$0]  %s18, 8320, %s20, [#allocation3], 128, 128, 8
    $region13: #{forward.1} parent=1 // pred_fallthru
      _
    // Predicated region
    $region14: #{forward.1} parent=1 // pred_check
      _
    $region15: #{forward.1} parent=1 // pred_check_branch
      %27 = sbr.rel (0) target = $region17
    $region16: #{forward.1} parent=1 // pred_region
      %29 = dma.done [#allocation3], 8320
    $region17: #{forward.1} parent=1 // pred_fallthru
      _
    %v30 = vld [vmem:[%s1] sm:$0xff]
    %v31 = vlaneseq
    %v32 = vand.u32 %v31, 127
    %33 = vset.pattern.permute.xlu0 0
    %34 = vperm.xlu0 %33, %v30
    %v35 = vpop.permute.xlu0 %34
    %vm36 = vcmp.eq.s32.totalorder %v35, %v32
    %v37 = vsel %vm36, 1, 0
    %v38 = vcvt.s32.f32 %v37
    %39 = vset.pattern.permute.xlu0 1
    %40 = vperm.xlu0 %39, %v30
    %v41 = vpop.permute.xlu0 %40
    %vm42 = vcmp.eq.s32.totalorder %v41, %v32
    %v43 = vsel %vm42, 1, 0
    %v44 = vcvt.s32.f32 %v43
    %45 = vset.pattern.permute.xlu0 2
    %46 = vperm.xlu0 %45, %v30
    %v47 = vpop.permute.xlu0 %46
    %vm48 = vcmp.eq.s32.totalorder %v47, %v32
    %v49 = vsel %vm48, 1, 0
    %v50 = vcvt.s32.f32 %v49
    %51 = vset.pattern.permute.xlu0 3
    %52 = vperm.xlu0 %51, %v30
    %v53 = vpop.permute.xlu0 %52
    %vm54 = vcmp.eq.s32.totalorder %v53, %v32
    %v55 = vsel %vm54, 1, 0
    %v56 = vcvt.s32.f32 %v55
    %57 = vset.pattern.permute.xlu0 4
    %58 = vperm.xlu0 %57, %v30
    %v59 = vpop.permute.xlu0 %58
    %vm60 = vcmp.eq.s32.totalorder %v59, %v32
    %v61 = vsel %vm60, 1, 0
    %v62 = vcvt.s32.f32 %v61
    %63 = vset.pattern.permute.xlu0 5
    %64 = vperm.xlu0 %63, %v30
    %v65 = vpop.permute.xlu0 %64
    %vm66 = vcmp.eq.s32.totalorder %v65, %v32
    %v67 = vsel %vm66, 1, 0
    %v68 = vcvt.s32.f32 %v67
    %v69 = vld [vmem:[#allocation2] sm:$0xff]
    %v70 = vld [vmem:[#allocation2 + $0x8] sm:$0xff]
    %v71 = vld [vmem:[#allocation2 + $0x10] sm:$0xff]
    %v72 = vld [vmem:[#allocation2 + $0x18] sm:$0xff]
    %v73 = vld [vmem:[#allocation2 + $0x20] sm:$0xff]
    %v74 = vld [vmem:[#allocation2 + $0x28] sm:$0xff]
    %v75 = vld [vmem:[#allocation2 + $0x30] sm:$0xff]
    %vm76 = vcmask 457728
    %v78 = vsel %vm76, %v38, 0
    %v81 = vsel %vm76, %v44, 0
    %v84 = vsel %vm76, %v50, 0
    %v87 = vsel %vm76, %v56, 0
    %v90 = vsel %vm76, %v62, 0
    %v93 = vsel %vm76, %v68, 0
    %95 = vmatpush.msra.mxu0 0.0
    %96 = vmatpush.msra.mxu0 0.0
    %97 = vmatpush.msra.mxu0 0.0
    %98 = vmatpush.msra.mxu0 0.0
    %99 = vmatpush.msra.mxu0 0.0
    %100 = vmatpush.msra.mxu0 0.0
    %101 = vmatpush.msra.mxu0 0.0
    %102 = vmatpush.msra.mxu0 0.0
    %103 = vmatpush.msra.mxu0 0.0
    %104 = vmatpush.msra.mxu0 %v75
    %105 = vmatpush.msra.mxu0 %v74
    %106 = vmatpush.msra.mxu0 %v73
    %107 = vmatpush.msra.mxu0 %v72
    %108 = vmatpush.msra.mxu0 %v71
    %109 = vmatpush.msra.mxu0 %v70
    %110 = vmatpush.msra.mxu0 %v69
    %111 = vmatmul.f32.gmra.mxu0 %v78
    %v112 = vpop.f32.mrf.mxu0
    %v113 = vadd.f32 0.0, %v112
    %114 = vmatmul.f32.gmra.mxu0 %v81
    %v115 = vpop.f32.mrf.mxu0
    %v116 = vadd.f32 0.0, %v115
    %117 = vmatmul.f32.gmra.mxu0 %v84
    %v118 = vpop.f32.mrf.mxu0
    %v119 = vadd.f32 0.0, %v118
    %120 = vmatmul.f32.gmra.mxu0 %v87
    %v121 = vpop.f32.mrf.mxu0
    %v122 = vadd.f32 0.0, %v121
    %123 = vmatmul.f32.gmra.mxu0 %v90
    %v124 = vpop.f32.mrf.mxu0
    %v125 = vadd.f32 0.0, %v124
    %126 = vmatmul.f32.gmra.mxu0 %v93
    %v127 = vpop.f32.mrf.mxu0
    %v128 = vadd.f32 0.0, %v127
    %129 = vdwg.mxu0
    %v130 = vld [vmem:[#allocation2 + $0x38] sm:$0xff]
    %v131 = vld [vmem:[#allocation2 + $0x40] sm:$0xff]
    %v132 = vld [vmem:[#allocation2 + $0x48] sm:$0xff]
    %v133 = vld [vmem:[#allocation2 + $0x50] sm:$0xff]
    %v134 = vld [vmem:[#allocation2 + $0x58] sm:$0xff]
    %v135 = vld [vmem:[#allocation2 + $0x60] sm:$0xff]
    %v136 = vld [vmem:[#allocation2 + $0x68] sm:$0xff]
    %137 = vmatpush.msra.mxu0 0.0
    %138 = vmatpush.msra.mxu0 0.0
    %139 = vmatpush.msra.mxu0 0.0
    %140 = vmatpush.msra.mxu0 0.0
    %141 = vmatpush.msra.mxu0 0.0
    %142 = vmatpush.msra.mxu0 0.0
    %143 = vmatpush.msra.mxu0 0.0
    %144 = vmatpush.msra.mxu0 0.0
    %145 = vmatpush.msra.mxu0 0.0
    %146 = vmatpush.msra.mxu0 %v136
    %147 = vmatpush.msra.mxu0 %v135
    %148 = vmatpush.msra.mxu0 %v134
    %149 = vmatpush.msra.mxu0 %v133
    %150 = vmatpush.msra.mxu0 %v132
    %151 = vmatpush.msra.mxu0 %v131
    %152 = vmatpush.msra.mxu0 %v130
    %153 = vmatmul.f32.gmra.mxu0 %v78
    %v154 = vpop.f32.mrf.mxu0
    %v155 = vadd.f32 0.0, %v154
    %156 = vmatmul.f32.gmra.mxu0 %v81
    %v157 = vpop.f32.mrf.mxu0
    %v158 = vadd.f32 0.0, %v157
    %159 = vmatmul.f32.gmra.mxu0 %v84
    %v160 = vpop.f32.mrf.mxu0
    %v161 = vadd.f32 0.0, %v160
    %162 = vmatmul.f32.gmra.mxu0 %v87
    %v163 = vpop.f32.mrf.mxu0
    %v164 = vadd.f32 0.0, %v163
    %165 = vmatmul.f32.gmra.mxu0 %v90
    %v166 = vpop.f32.mrf.mxu0
    %v167 = vadd.f32 0.0, %v166
    %168 = vmatmul.f32.gmra.mxu0 %v93
    %v169 = vpop.f32.mrf.mxu0
    %v170 = vadd.f32 0.0, %v169
    %171 = vdwg.mxu0
    %v172 = vld [vmem:[#allocation2 + $0x200] sm:$0x1]
    %v173 = vadd.f32 %v113, %v170
    %v174 = vperm.slane %v172, 0
    %v175 = vadd.f32 %v173, %v174
    %v176 = vadd.f32 %v116, %v167
    %v177 = vadd.f32 %v176, %v174
    %v178 = vadd.f32 %v119, %v164
    %v179 = vadd.f32 %v178, %v174
    %v180 = vadd.f32 %v122, %v161
    %v181 = vadd.f32 %v180, %v174
    %v182 = vadd.f32 %v125, %v158
    %v183 = vadd.f32 %v182, %v174
    %v184 = vadd.f32 %v128, %v155
    %v185 = vadd.f32 %v184, %v174
    %v186 = vld [vmem:[#allocation2 + $0x140] sm:$0xff]
    %v187 = vld [vmem:[#allocation2 + $0x148] sm:$0xff]
    %v188 = vld [vmem:[#allocation2 + $0x150] sm:$0xff]
    %v189 = vld [vmem:[#allocation2 + $0x158] sm:$0xff]
    %vm190 = vcmask 261120
    %v192 = vsel %vm190, 0.0, 0
    %194 = vmatpush.msra.mxu0 0.0
    %195 = vmatpush.msra.mxu0 0.0
    %196 = vmatpush.msra.mxu0 0.0
    %197 = vmatpush.msra.mxu0 0.0
    %198 = vmatpush.msra.mxu0 0.0
    %199 = vmatpush.msra.mxu0 0.0
    %200 = vmatpush.msra.mxu0 0.0
    %201 = vmatpush.msra.mxu0 0.0
    %202 = vmatpush.msra.mxu0 0.0
    %203 = vmatpush.msra.mxu0 0.0
    %204 = vmatpush.msra.mxu0 0.0
    %205 = vmatpush.msra.mxu0 0.0
    %206 = vmatpush.msra.mxu0 %v189
    %207 = vmatpush.msra.mxu0 %v188
    %208 = vmatpush.msra.mxu0 %v187
    %209 = vmatpush.msra.mxu0 %v186
    %210 = vmatmul.f32.gmra.mxu0 %v192
    %v211 = vpop.f32.mrf.mxu0
    %v212 = vadd.f32 0.0, %v211
    %213 = vdwg.mxu0
    %v214 = vadd.f32 %v175, %v212
    %v215 = vxor.u32 %v214, 2147483648
    %v216 = vmul.f32 %v215, 1.442695
    %v217 = vpow.pop %v216
    %v218 = vadd.f32 %v217, 1.0
    %v219 = vrcp.pop %v218
    %v220 = vmul.f32 %v218, %v219
    %v221 = vsub.f32 1.0, %v220
    %v222 = vmul.f32 %v219, %v221
    %v223 = vadd.f32 %v219, %v222
    %vm224 = vweird.f32 %v218
    %vm225 = vweird.f32 %v219
    %vm226 = vmor %vm224, %vm225
    %v227 = vsel %vm226, %v219, %v223
    %v228 = vand.u32 2147483647, %v218
    %vm229 = vcmp.eq.f32.partialorder %v228, 8.507059e+37
    %v230 = vand.u32 %v218, 2147483648
    %v231 = vor.u32 1.1754944e-38, %v230
    %v232 = vsel %vm229, %v231, %v227
    %v233 = vmul.f32 1.0, %v232
    %v234 = vtanh.pop %v214
    %v235 = vmul.f32 %v233, 0.0
    %237 = vrot.lane.b32.xlu0 %v234, 64
    %v238 = vpop.permute.xlu0 %237
    %v240 = vmul.f32 %v233, %v238
    %242 = vrot.lane.b32.xlu0 %v240, 32
    %v243 = vpop.permute.xlu0 %242
    %v245 = vadd.f32 %v235, %v243
    %v246 = vtanh.pop %v245
    %248 = vrot.lane.b32.xlu0 %v246, 64
    %v249 = vpop.permute.xlu0 %248
    %v251 = vmul.f32 %v233, %v249
    %253 = vrot.lane.b32.xlu0 %v251, 32
    %v254 = vpop.permute.xlu0 %253
    %v255 = vsel %vm190, %v254, 0
    %257 = vmatpush.msra.mxu0 0.0
    %258 = vmatpush.msra.mxu0 0.0
    %259 = vmatpush.msra.mxu0 0.0
    %260 = vmatpush.msra.mxu0 0.0
    %261 = vmatpush.msra.mxu0 0.0
    %262 = vmatpush.msra.mxu0 0.0
    %263 = vmatpush.msra.mxu0 0.0
    %264 = vmatpush.msra.mxu0 0.0
    %265 = vmatpush.msra.mxu0 0.0
    %266 = vmatpush.msra.mxu0 0.0
    %267 = vmatpush.msra.mxu0 0.0
    %268 = vmatpush.msra.mxu0 0.0
    %269 = vmatpush.msra.mxu0 %v189
    %270 = vmatpush.msra.mxu0 %v188
    %271 = vmatpush.msra.mxu0 %v187
    %272 = vmatpush.msra.mxu0 %v186
    %273 = vmatmul.f32.gmra.mxu0 %v255
    %v274 = vpop.f32.mrf.mxu0
    %v275 = vadd.f32 0.0, %v274
    %276 = vdwg.mxu0
    %v277 = vadd.f32 %v177, %v275
    %v278 = vxor.u32 %v277, 2147483648
    %v279 = vmul.f32 %v278, 1.442695
    %v280 = vpow.pop %v279
    %v281 = vadd.f32 %v280, 1.0
    %v282 = vrcp.pop %v281
    %v283 = vmul.f32 %v281, %v282
    %v284 = vsub.f32 1.0, %v283
    %v285 = vmul.f32 %v282, %v284
    %v286 = vadd.f32 %v282, %v285
    %vm287 = vweird.f32 %v281
    %vm288 = vweird.f32 %v282
    %vm289 = vmor %vm287, %vm288
    %v290 = vsel %vm289, %v282, %v286
    %v291 = vand.u32 2147483647, %v281
    %vm292 = vcmp.eq.f32.partialorder %v291, 8.507059e+37
    %v293 = vand.u32 %v281, 2147483648
    %v294 = vor.u32 1.1754944e-38, %v293
    %v295 = vsel %vm292, %v294, %v290
    %v296 = vmul.f32 1.0, %v295
    %v297 = vtanh.pop %v277
    %v298 = vmul.f32 %v296, %v245
    %300 = vrot.lane.b32.xlu0 %v297, 64
    %v301 = vpop.permute.xlu0 %300
    %v303 = vmul.f32 %v296, %v301
    %305 = vrot.lane.b32.xlu0 %v303, 32
    %v306 = vpop.permute.xlu0 %305
    %v308 = vadd.f32 %v298, %v306
    %v309 = vtanh.pop %v308
    %311 = vrot.lane.b32.xlu0 %v309, 64
    %v312 = vpop.permute.xlu0 %311
    %v314 = vmul.f32 %v296, %v312
    %316 = vrot.lane.b32.xlu0 %v314, 32
    %v317 = vpop.permute.xlu0 %316
    %v318 = vsel %vm190, %v317, 0
    %320 = vmatpush.msra.mxu0 0.0
    %321 = vmatpush.msra.mxu0 0.0
    %322 = vmatpush.msra.mxu0 0.0
    %323 = vmatpush.msra.mxu0 0.0
    %324 = vmatpush.msra.mxu0 0.0
    %325 = vmatpush.msra.mxu0 0.0
    %326 = vmatpush.msra.mxu0 0.0
    %327 = vmatpush.msra.mxu0 0.0
    %328 = vmatpush.msra.mxu0 0.0
    %329 = vmatpush.msra.mxu0 0.0
    %330 = vmatpush.msra.mxu0 0.0
    %331 = vmatpush.msra.mxu0 0.0
    %332 = vmatpush.msra.mxu0 %v189
    %333 = vmatpush.msra.mxu0 %v188
    %334 = vmatpush.msra.mxu0 %v187
    %335 = vmatpush.msra.mxu0 %v186
    %336 = vmatmul.f32.gmra.mxu0 %v318
    %v337 = vpop.f32.mrf.mxu0
    %v338 = vadd.f32 0.0, %v337
    %339 = vdwg.mxu0
    %v340 = vadd.f32 %v179, %v338
    %v341 = vxor.u32 %v340, 2147483648
    %v342 = vmul.f32 %v341, 1.442695
    %v343 = vpow.pop %v342
    %v344 = vadd.f32 %v343, 1.0
    %v345 = vrcp.pop %v344
    %v346 = vmul.f32 %v344, %v345
    %v347 = vsub.f32 1.0, %v346
    %v348 = vmul.f32 %v345, %v347
    %v349 = vadd.f32 %v345, %v348
    %vm350 = vweird.f32 %v344
    %vm351 = vweird.f32 %v345
    %vm352 = vmor %vm350, %vm351
    %v353 = vsel %vm352, %v345, %v349
    %v354 = vand.u32 2147483647, %v344
    %vm355 = vcmp.eq.f32.partialorder %v354, 8.507059e+37
    %v356 = vand.u32 %v344, 2147483648
    %v357 = vor.u32 1.1754944e-38, %v356
    %v358 = vsel %vm355, %v357, %v353
    %v359 = vmul.f32 1.0, %v358
    %v360 = vtanh.pop %v340
    %v361 = vmul.f32 %v359, %v308
    %363 = vrot.lane.b32.xlu0 %v360, 64
    %v364 = vpop.permute.xlu0 %363
    %v366 = vmul.f32 %v359, %v364
    %368 = vrot.lane.b32.xlu0 %v366, 32
    %v369 = vpop.permute.xlu0 %368
    %v371 = vadd.f32 %v361, %v369
    %v372 = vtanh.pop %v371
    %374 = vrot.lane.b32.xlu0 %v372, 64
    %v375 = vpop.permute.xlu0 %374
    %v377 = vmul.f32 %v359, %v375
    %379 = vrot.lane.b32.xlu0 %v377, 32
    %v380 = vpop.permute.xlu0 %379
    %v381 = vsel %vm190, %v380, 0
    %383 = vmatpush.msra.mxu0 0.0
    %384 = vmatpush.msra.mxu0 0.0
    %385 = vmatpush.msra.mxu0 0.0
    %386 = vmatpush.msra.mxu0 0.0
    %387 = vmatpush.msra.mxu0 0.0
    %388 = vmatpush.msra.mxu0 0.0
    %389 = vmatpush.msra.mxu0 0.0
    %390 = vmatpush.msra.mxu0 0.0
    %391 = vmatpush.msra.mxu0 0.0
    %392 = vmatpush.msra.mxu0 0.0
    %393 = vmatpush.msra.mxu0 0.0
    %394 = vmatpush.msra.mxu0 0.0
    %395 = vmatpush.msra.mxu0 %v189
    %396 = vmatpush.msra.mxu0 %v188
    %397 = vmatpush.msra.mxu0 %v187
    %398 = vmatpush.msra.mxu0 %v186
    %399 = vmatmul.f32.gmra.mxu0 %v381
    %v400 = vpop.f32.mrf.mxu0
    %v401 = vadd.f32 0.0, %v400
    %402 = vdwg.mxu0
    %v403 = vadd.f32 %v181, %v401
    %v404 = vxor.u32 %v403, 2147483648
    %v405 = vmul.f32 %v404, 1.442695
    %v406 = vpow.pop %v405
    %v407 = vadd.f32 %v406, 1.0
    %v408 = vrcp.pop %v407
    %v409 = vmul.f32 %v407, %v408
    %v410 = vsub.f32 1.0, %v409
    %v411 = vmul.f32 %v408, %v410
    %v412 = vadd.f32 %v408, %v411
    %vm413 = vweird.f32 %v407
    %vm414 = vweird.f32 %v408
    %vm415 = vmor %vm413, %vm414
    %v416 = vsel %vm415, %v408, %v412
    %v417 = vand.u32 2147483647, %v407
    %vm418 = vcmp.eq.f32.partialorder %v417, 8.507059e+37
    %v419 = vand.u32 %v407, 2147483648
    %v420 = vor.u32 1.1754944e-38, %v419
    %v421 = vsel %vm418, %v420, %v416
    %v422 = vmul.f32 1.0, %v421
    %v423 = vtanh.pop %v403
    %v424 = vmul.f32 %v422, %v371
    %426 = vrot.lane.b32.xlu0 %v423, 64
    %v427 = vpop.permute.xlu0 %426
    %v429 = vmul.f32 %v422, %v427
    %431 = vrot.lane.b32.xlu0 %v429, 32
    %v432 = vpop.permute.xlu0 %431
    %v434 = vadd.f32 %v424, %v432
    %v435 = vtanh.pop %v434
    %437 = vrot.lane.b32.xlu0 %v435, 64
    %v438 = vpop.permute.xlu0 %437
    %v440 = vmul.f32 %v422, %v438
    %442 = vrot.lane.b32.xlu0 %v440, 32
    %v443 = vpop.permute.xlu0 %442
    %v444 = vsel %vm190, %v443, 0
    %446 = vmatpush.msra.mxu0 0.0
    %447 = vmatpush.msra.mxu0 0.0
    %448 = vmatpush.msra.mxu0 0.0
    %449 = vmatpush.msra.mxu0 0.0
    %450 = vmatpush.msra.mxu0 0.0
    %451 = vmatpush.msra.mxu0 0.0
    %452 = vmatpush.msra.mxu0 0.0
    %453 = vmatpush.msra.mxu0 0.0
    %454 = vmatpush.msra.mxu0 0.0
    %455 = vmatpush.msra.mxu0 0.0
    %456 = vmatpush.msra.mxu0 0.0
    %457 = vmatpush.msra.mxu0 0.0
    %458 = vmatpush.msra.mxu0 %v189
    %459 = vmatpush.msra.mxu0 %v188
    %460 = vmatpush.msra.mxu0 %v187
    %461 = vmatpush.msra.mxu0 %v186
    %462 = vmatmul.f32.gmra.mxu0 %v444
    %v463 = vpop.f32.mrf.mxu0
    %v464 = vadd.f32 0.0, %v463
    %465 = vdwg.mxu0
    %v466 = vadd.f32 %v183, %v464
    %v467 = vxor.u32 %v466, 2147483648
    %v468 = vmul.f32 %v467, 1.442695
    %v469 = vpow.pop %v468
    %v470 = vadd.f32 %v469, 1.0
    %v471 = vrcp.pop %v470
    %v472 = vmul.f32 %v470, %v471
    %v473 = vsub.f32 1.0, %v472
    %v474 = vmul.f32 %v471, %v473
    %v475 = vadd.f32 %v471, %v474
    %vm476 = vweird.f32 %v470
    %vm477 = vweird.f32 %v471
    %vm478 = vmor %vm476, %vm477
    %v479 = vsel %vm478, %v471, %v475
    %v480 = vand.u32 2147483647, %v470
    %vm481 = vcmp.eq.f32.partialorder %v480, 8.507059e+37
    %v482 = vand.u32 %v470, 2147483648
    %v483 = vor.u32 1.1754944e-38, %v482
    %v484 = vsel %vm481, %v483, %v479
    %v485 = vmul.f32 1.0, %v484
    %v486 = vtanh.pop %v466
    %v487 = vmul.f32 %v485, %v434
    %489 = vrot.lane.b32.xlu0 %v486, 64
    %v490 = vpop.permute.xlu0 %489
    %v492 = vmul.f32 %v485, %v490
    %494 = vrot.lane.b32.xlu0 %v492, 32
    %v495 = vpop.permute.xlu0 %494
    %v497 = vadd.f32 %v487, %v495
    %v498 = vtanh.pop %v497
    %500 = vrot.lane.b32.xlu0 %v498, 64
    %v501 = vpop.permute.xlu0 %500
    %v503 = vmul.f32 %v485, %v501
    %505 = vrot.lane.b32.xlu0 %v503, 32
    %v506 = vpop.permute.xlu0 %505
    %v507 = vsel %vm190, %v506, 0
    %509 = vmatpush.msra.mxu0 0.0
    %510 = vmatpush.msra.mxu0 0.0
    %511 = vmatpush.msra.mxu0 0.0
    %512 = vmatpush.msra.mxu0 0.0
    %513 = vmatpush.msra.mxu0 0.0
    %514 = vmatpush.msra.mxu0 0.0
    %515 = vmatpush.msra.mxu0 0.0
    %516 = vmatpush.msra.mxu0 0.0
    %517 = vmatpush.msra.mxu0 0.0
    %518 = vmatpush.msra.mxu0 0.0
    %519 = vmatpush.msra.mxu0 0.0
    %520 = vmatpush.msra.mxu0 0.0
    %521 = vmatpush.msra.mxu0 %v189
    %522 = vmatpush.msra.mxu0 %v188
    %523 = vmatpush.msra.mxu0 %v187
    %524 = vmatpush.msra.mxu0 %v186
    %525 = vmatmul.f32.gmra.mxu0 %v507
    %v526 = vpop.f32.mrf.mxu0
    %v527 = vadd.f32 0.0, %v526
    %528 = vdwg.mxu0
    %v529 = vadd.f32 %v185, %v527
    %v530 = vxor.u32 %v529, 2147483648
    %v531 = vmul.f32 %v530, 1.442695
    %v532 = vpow.pop %v531
    %v533 = vadd.f32 %v532, 1.0
    %v534 = vrcp.pop %v533
    %v535 = vmul.f32 %v533, %v534
    %v536 = vsub.f32 1.0, %v535
    %v537 = vmul.f32 %v534, %v536
    %v538 = vadd.f32 %v534, %v537
    %vm539 = vweird.f32 %v533
    %vm540 = vweird.f32 %v534
    %vm541 = vmor %vm539, %vm540
    %v542 = vsel %vm541, %v534, %v538
    %v543 = vand.u32 2147483647, %v533
    %vm544 = vcmp.eq.f32.partialorder %v543, 8.507059e+37
    %v545 = vand.u32 %v533, 2147483648
    %v546 = vor.u32 1.1754944e-38, %v545
    %v547 = vsel %vm544, %v546, %v542
    %v548 = vmul.f32 1.0, %v547
    %v549 = vtanh.pop %v529
    %v550 = vmul.f32 %v548, %v497
    %552 = vrot.lane.b32.xlu0 %v549, 64
    %v553 = vpop.permute.xlu0 %552
    %v555 = vmul.f32 %v548, %v553
    %557 = vrot.lane.b32.xlu0 %v555, 32
    %v558 = vpop.permute.xlu0 %557
    %v560 = vadd.f32 %v550, %v558
    %v561 = vtanh.pop %v560
    %563 = vrot.lane.b32.xlu0 %v561, 64
    %v564 = vpop.permute.xlu0 %563
    %v566 = vmul.f32 %v548, %v564
    %569 = vrot.lane.b32.xlu0 %v566, 32
    %v570 = vpop.permute.xlu0 %569
    %vm572 = vcmask 130048
    %v573 = vsel %vm572, %v254, %v570
    %v576 = vsel %vm572, %v317, %v506
    %v579 = vsel %vm572, %v380, %v443
    %v580 = vsel %vm572, %v443, %v380
    %v581 = vsel %vm572, %v506, %v317
    %v582 = vsel %vm572, %v570, %v254
    %v583 = vld [vmem:[#allocation2 + $0x1c0] sm:$0xff]
    %v584 = vld [vmem:[#allocation2 + $0x1c8] sm:$0xff]
    %v585 = vld [vmem:[#allocation2 + $0x1d0] sm:$0xff]
    %v586 = vld [vmem:[#allocation2 + $0x1d8] sm:$0xff]
    %v587 = vld [vmem:[#allocation2 + $0x202] sm:$0x1]
    %v588 = vld [vmem:[#allocation2 + $0x203] sm:$0x1]
    %v589 = vperm.slane %v587, 0
    %v591 = vsel %vm190, %v573, 0
    %v594 = vsel %vm190, %v576, 0
    %v597 = vsel %vm190, %v579, 0
    %v600 = vsel %vm190, %v580, 0
    %v603 = vsel %vm190, %v581, 0
    %v606 = vsel %vm190, %v582, 0
    %608 = vmatpush.msra.mxu0 0.0
    %609 = vmatpush.msra.mxu0 0.0
    %610 = vmatpush.msra.mxu0 0.0
    %611 = vmatpush.msra.mxu0 0.0
    %612 = vmatpush.msra.mxu0 0.0
    %613 = vmatpush.msra.mxu0 0.0
    %614 = vmatpush.msra.mxu0 0.0
    %615 = vmatpush.msra.mxu0 0.0
    %616 = vmatpush.msra.mxu0 0.0
    %617 = vmatpush.msra.mxu0 0.0
    %618 = vmatpush.msra.mxu0 0.0
    %619 = vmatpush.msra.mxu0 0.0
    %620 = vmatpush.msra.mxu0 %v586
    %621 = vmatpush.msra.mxu0 %v585
    %622 = vmatpush.msra.mxu0 %v584
    %623 = vmatpush.msra.mxu0 %v583
    %624 = vmatmul.f32.gmra.mxu0 %v591
    %v625 = vpop.f32.mrf.mxu0
    %v626 = vadd.f32 %v589, %v625
    %627 = vmatmul.f32.gmra.mxu0 %v594
    %v628 = vpop.f32.mrf.mxu0
    %v629 = vadd.f32 %v589, %v628
    %630 = vmatmul.f32.gmra.mxu0 %v597
    %v631 = vpop.f32.mrf.mxu0
    %v632 = vadd.f32 %v589, %v631
    %633 = vmatmul.f32.gmra.mxu0 %v600
    %v634 = vpop.f32.mrf.mxu0
    %v635 = vadd.f32 %v589, %v634
    %636 = vmatmul.f32.gmra.mxu0 %v603
    %v637 = vpop.f32.mrf.mxu0
    %v638 = vadd.f32 %v589, %v637
    %639 = vmatmul.f32.gmra.mxu0 %v606
    %v640 = vpop.f32.mrf.mxu0
    %v641 = vadd.f32 %v589, %v640
    %642 = vdwg.mxu0
    %v643 = vtanh.pop %v626
    %v644 = vtanh.pop %v629
    %v645 = vtanh.pop %v632
    %v646 = vtanh.pop %v635
    %v647 = vtanh.pop %v638
    %v648 = vtanh.pop %v641
    %v649 = vperm.slane %v588, 0
    %v650 = vmul.f32 %v649, %v643
    %v651 = vmul.f32 %v649, %v644
    %v652 = vmul.f32 %v649, %v645
    %v653 = vmul.f32 %v649, %v646
    %v654 = vmul.f32 %v649, %v647
    %v655 = vmul.f32 %v649, %v648
    %656 = vadd.xlane.f32.xlu0 %v650
    %v657 = vpop.xlane.xlu0 %656
    %658 = vadd.xlane.f32.xlu0 %v651
    %v659 = vpop.xlane.xlu0 %658
    %660 = vadd.xlane.f32.xlu0 %v652
    %v661 = vpop.xlane.xlu0 %660
    %662 = vadd.xlane.f32.xlu0 %v653
    %v663 = vpop.xlane.xlu0 %662
    %664 = vadd.xlane.f32.xlu0 %v654
    %v665 = vpop.xlane.xlu0 %664
    %666 = vadd.xlane.f32.xlu0 %v655
    %v667 = vpop.xlane.xlu0 %666
    %v668 = vmax.f32 %v657, %v659
    %v669 = vmax.f32 %v668, %v661
    %v670 = vmax.f32 %v669, %v663
    %v671 = vmax.f32 %v670, %v665
    %v672 = vmax.f32 %v671, %v667
    %v673 = vsub.f32 %v657, %v672
    %v674 = vmul.f32 %v673, 1.442695
    %v675 = vpow.pop %v674
    %v676 = vsub.f32 %v659, %v672
    %v677 = vmul.f32 %v676, 1.442695
    %v678 = vpow.pop %v677
    %v679 = vsub.f32 %v661, %v672
    %v680 = vmul.f32 %v679, 1.442695
    %v681 = vpow.pop %v680
    %v682 = vsub.f32 %v663, %v672
    %v683 = vmul.f32 %v682, 1.442695
    %v684 = vpow.pop %v683
    %v685 = vsub.f32 %v665, %v672
    %v686 = vmul.f32 %v685, 1.442695
    %v687 = vpow.pop %v686
    %v688 = vsub.f32 %v667, %v672
    %v689 = vmul.f32 %v688, 1.442695
    %v690 = vpow.pop %v689
    %v691 = vadd.f32 %v675, %v678
    %v692 = vadd.f32 %v691, %v681
    %v693 = vadd.f32 %v692, %v684
    %v694 = vadd.f32 %v693, %v687
    %v695 = vadd.f32 %v694, %v690
    %v696 = vrcp.pop %v695
    %v697 = vmul.f32 %v675, %v696
    %v698 = vmul.f32 %v697, %v573
    %v699 = vmul.f32 %v678, %v696
    %v700 = vmul.f32 %v699, %v576
    %v701 = vadd.f32 %v698, %v700
    %v702 = vmul.f32 %v681, %v696
    %v703 = vmul.f32 %v702, %v579
    %v704 = vadd.f32 %v701, %v703
    %v705 = vmul.f32 %v684, %v696
    %v706 = vmul.f32 %v705, %v580
    %v707 = vadd.f32 %v704, %v706
    %v708 = vmul.f32 %v687, %v696
    %v709 = vmul.f32 %v708, %v581
    %v710 = vadd.f32 %v707, %v709
    %v711 = vmul.f32 %v690, %v696
    %v712 = vmul.f32 %v711, %v582
    %v713 = vadd.f32 %v710, %v712
    %v714 = vld [vmem:[%s0] sm:$0xff]
    %715 = vset.pattern.permute.xlu0 0
    %716 = vperm.xlu0 %715, %v714
    %v717 = vpop.permute.xlu0 %716
    %vm718 = vcmp.eq.s32.totalorder %v717, %v32
    %v719 = vsel %vm718, 1, 0
    %v720 = vcvt.s32.f32 %v719
    %v721 = vld [vmem:[#allocation2 + $0x70] sm:$0xff]
    %v722 = vld [vmem:[#allocation2 + $0x78] sm:$0xff]
    %v723 = vld [vmem:[#allocation2 + $0x80] sm:$0xff]
    %v724 = vld [vmem:[#allocation2 + $0x88] sm:$0xff]
    %v725 = vld [vmem:[#allocation2 + $0x90] sm:$0xff]
    %v726 = vld [vmem:[#allocation2 + $0x98] sm:$0xff]
    %v727 = vld [vmem:[#allocation2 + $0xa0] sm:$0xff]
    %v728 = vld [vmem:[#allocation2 + $0xa8] sm:$0xff]
    %v729 = vld [vmem:[#allocation2 + $0xb0] sm:$0xff]
    %v730 = vld [vmem:[#allocation2 + $0xb8] sm:$0xff]
    %v731 = vld [vmem:[#allocation2 + $0xc0] sm:$0xff]
    %v732 = vld [vmem:[#allocation2 + $0xc8] sm:$0xff]
    %v733 = vld [vmem:[#allocation2 + $0xd0] sm:$0xff]
    %v734 = vld [vmem:[#allocation2 + $0x180] sm:$0xff]
    %v735 = vld [vmem:[#allocation2 + $0x188] sm:$0xff]
    %v736 = vld [vmem:[#allocation2 + $0x190] sm:$0xff]
    %v737 = vld [vmem:[#allocation2 + $0x198] sm:$0xff]
    %v739 = vsel %vm190, %v713, 0
    %741 = vmatpush.msra.mxu0 0.0
    %742 = vmatpush.msra.mxu0 0.0
    %743 = vmatpush.msra.mxu0 0.0
    %744 = vmatpush.msra.mxu0 0.0
    %745 = vmatpush.msra.mxu0 0.0
    %746 = vmatpush.msra.mxu0 0.0
    %747 = vmatpush.msra.mxu0 0.0
    %748 = vmatpush.msra.mxu0 0.0
    %749 = vmatpush.msra.mxu0 0.0
    %750 = vmatpush.msra.mxu0 0.0
    %751 = vmatpush.msra.mxu0 0.0
    %752 = vmatpush.msra.mxu0 0.0
    %753 = vmatpush.msra.mxu0 %v737
    %754 = vmatpush.msra.mxu0 %v736
    %755 = vmatpush.msra.mxu0 %v735
    %756 = vmatpush.msra.mxu0 %v734
    %757 = vmatmul.f32.gmra.mxu0 %v739
    %v758 = vpop.f32.mrf.mxu0
    %v759 = vadd.f32 0.0, %v758
    %760 = vdwg.mxu0
    %vm761 = vcmask 850944
    %v763 = vsel %vm761, %v720, 0
    %765 = vmatpush.msra.mxu0 0.0
    %766 = vmatpush.msra.mxu0 0.0
    %767 = vmatpush.msra.mxu0 0.0
    %768 = vmatpush.msra.mxu0 %v733
    %769 = vmatpush.msra.mxu0 %v732
    %770 = vmatpush.msra.mxu0 %v731
    %771 = vmatpush.msra.mxu0 %v730
    %772 = vmatpush.msra.mxu0 %v729
    %773 = vmatpush.msra.mxu0 %v728
    %774 = vmatpush.msra.mxu0 %v727
    %775 = vmatpush.msra.mxu0 %v726
    %776 = vmatpush.msra.mxu0 %v725
    %777 = vmatpush.msra.mxu0 %v724
    %778 = vmatpush.msra.mxu0 %v723
    %779 = vmatpush.msra.mxu0 %v722
    %780 = vmatpush.msra.mxu0 %v721
    %781 = vmatmul.f32.gmra.mxu0 %v763
    %v782 = vpop.f32.mrf.mxu0
    %v783 = vadd.f32 %v759, %v782
    %784 = vdwg.mxu0
    %v785 = vld [vmem:[#allocation2 + $0xd8] sm:$0xff]
    %v786 = vld [vmem:[#allocation2 + $0xe0] sm:$0xff]
    %v787 = vld [vmem:[#allocation2 + $0xe8] sm:$0xff]
    %v788 = vld [vmem:[#allocation2 + $0xf0] sm:$0xff]
    %v789 = vld [vmem:[#allocation2 + $0xf8] sm:$0xff]
    %v790 = vld [vmem:[#allocation2 + $0x100] sm:$0xff]
    %v791 = vld [vmem:[#allocation2 + $0x108] sm:$0xff]
    %v792 = vld [vmem:[#allocation2 + $0x110] sm:$0xff]
    %v793 = vld [vmem:[#allocation2 + $0x118] sm:$0xff]
    %v794 = vld [vmem:[#allocation2 + $0x120] sm:$0xff]
    %v795 = vld [vmem:[#allocation2 + $0x128] sm:$0xff]
    %v796 = vld [vmem:[#allocation2 + $0x130] sm:$0xff]
    %v797 = vld [vmem:[#allocation2 + $0x138] sm:$0xff]
    %v798 = vld [vmem:[#allocation2 + $0x1a0] sm:$0xff]
    %v799 = vld [vmem:[#allocation2 + $0x1a8] sm:$0xff]
    %v800 = vld [vmem:[#allocation2 + $0x1b0] sm:$0xff]
    %v801 = vld [vmem:[#allocation2 + $0x1b8] sm:$0xff]
    %802 = vmatpush.msra.mxu0 0.0
    %803 = vmatpush.msra.mxu0 0.0
    %804 = vmatpush.msra.mxu0 0.0
    %805 = vmatpush.msra.mxu0 0.0
    %806 = vmatpush.msra.mxu0 0.0
    %807 = vmatpush.msra.mxu0 0.0
    %808 = vmatpush.msra.mxu0 0.0
    %809 = vmatpush.msra.mxu0 0.0
    %810 = vmatpush.msra.mxu0 0.0
    %811 = vmatpush.msra.mxu0 0.0
    %812 = vmatpush.msra.mxu0 0.0
    %813 = vmatpush.msra.mxu0 0.0
    %814 = vmatpush.msra.mxu0 %v801
    %815 = vmatpush.msra.mxu0 %v800
    %816 = vmatpush.msra.mxu0 %v799
    %817 = vmatpush.msra.mxu0 %v798
    %818 = vmatmul.f32.gmra.mxu0 %v739
    %v819 = vpop.f32.mrf.mxu0
    %v820 = vadd.f32 0.0, %v819
    %821 = vdwg.mxu0
    %822 = vmatpush.msra.mxu0 0.0
    %823 = vmatpush.msra.mxu0 0.0
    %824 = vmatpush.msra.mxu0 0.0
    %825 = vmatpush.msra.mxu0 %v797
    %826 = vmatpush.msra.mxu0 %v796
    %827 = vmatpush.msra.mxu0 %v795
    %828 = vmatpush.msra.mxu0 %v794
    %829 = vmatpush.msra.mxu0 %v793
    %830 = vmatpush.msra.mxu0 %v792
    %831 = vmatpush.msra.mxu0 %v791
    %832 = vmatpush.msra.mxu0 %v790
    %833 = vmatpush.msra.mxu0 %v789
    %834 = vmatpush.msra.mxu0 %v788
    %835 = vmatpush.msra.mxu0 %v787
    %836 = vmatpush.msra.mxu0 %v786
    %837 = vmatpush.msra.mxu0 %v785
    %838 = vmatmul.f32.gmra.mxu0 %v763
    %v839 = vpop.f32.mrf.mxu0
    %v840 = vadd.f32 %v820, %v839
    %841 = vdwg.mxu0
    %v842 = vld [vmem:[#allocation2 + $0x201] sm:$0x1]
    %v844 = vrot.slane %v840, 7
    %v846 = vadd.f32 %v783, %v844
    %v847 = vadd.f32 %v846, %v842
    %v848 = vrot.slane %v840, 5
    %v850 = vadd.f32 %v783, %v848
    %v852 = vrot.slane %v842, 7
    %v854 = vadd.f32 %v850, %v852
    %v855 = vrot.slane %v840, 3
    %v857 = vadd.f32 %v783, %v855
    %v858 = vrot.slane %v842, 6
    %v860 = vadd.f32 %v857, %v858
    %v861 = vrot.slane %v840, 1
    %v863 = vadd.f32 %v783, %v861
    %v864 = vrot.slane %v842, 5
    %v866 = vadd.f32 %v863, %v864
    %v867 = vrot.slane %v842, 4
    %v869 = vadd.f32 %v846, %v867
    %v870 = vrot.slane %v842, 3
    %v872 = vadd.f32 %v850, %v870
    %v873 = vrot.slane %v842, 2
    %v875 = vadd.f32 %v857, %v873
    %v876 = vrot.slane %v842, 1
    %v878 = vadd.f32 %v863, %v876
    %v879 = vld [vmem:[#allocation2 + $0x160] sm:$0xff]
    %v880 = vld [vmem:[#allocation2 + $0x168] sm:$0xff]
    %v881 = vld [vmem:[#allocation2 + $0x170] sm:$0xff]
    %v882 = vld [vmem:[#allocation2 + $0x178] sm:$0xff]
    %883 = vmatpush.msra.mxu0 0.0
    %884 = vmatpush.msra.mxu0 0.0
    %885 = vmatpush.msra.mxu0 0.0
    %886 = vmatpush.msra.mxu0 0.0
    %887 = vmatpush.msra.mxu0 0.0
    %888 = vmatpush.msra.mxu0 0.0
    %889 = vmatpush.msra.mxu0 0.0
    %890 = vmatpush.msra.mxu0 0.0
    %891 = vmatpush.msra.mxu0 0.0
    %892 = vmatpush.msra.mxu0 0.0
    %893 = vmatpush.msra.mxu0 0.0
    %894 = vmatpush.msra.mxu0 0.0
    %895 = vmatpush.msra.mxu0 %v882
    %896 = vmatpush.msra.mxu0 %v881
    %897 = vmatpush.msra.mxu0 %v880
    %898 = vmatpush.msra.mxu0 %v879
    %899 = vmatmul.f32.gmra.mxu0 %v192
    %v900 = vpop.f32.mrf.mxu0
    %v901 = vadd.f32 0.0, %v900
    %902 = vdwg.mxu0
    %v903 = vadd.f32 %v847, %v901
    %v904 = vxor.u32 %v903, 2147483648
    %v905 = vmul.f32 %v904, 1.442695
    %v906 = vpow.pop %v905
    %v907 = vadd.f32 %v906, 1.0
    %v908 = vrcp.pop %v907
    %v909 = vmul.f32 %v907, %v908
    %v910 = vsub.f32 1.0, %v909
    %v911 = vmul.f32 %v908, %v910
    %v912 = vadd.f32 %v908, %v911
    %vm913 = vweird.f32 %v907
    %vm914 = vweird.f32 %v908
    %vm915 = vmor %vm913, %vm914
    %v916 = vsel %vm915, %v908, %v912
    %v917 = vand.u32 2147483647, %v907
    %vm918 = vcmp.eq.f32.partialorder %v917, 8.507059e+37
    %v919 = vand.u32 %v907, 2147483648
    %v920 = vor.u32 1.1754944e-38, %v919
    %v921 = vsel %vm918, %v920, %v916
    %v922 = vmul.f32 1.0, %v921
    %v923 = vtanh.pop %v903
    %v924 = vmul.f32 %v922, 0.0
    %926 = vrot.lane.b32.xlu0 %v923, 64
    %v927 = vpop.permute.xlu0 %926
    %v929 = vmul.f32 %v922, %v927
    %931 = vrot.lane.b32.xlu0 %v929, 32
    %v932 = vpop.permute.xlu0 %931
    %v934 = vadd.f32 %v924, %v932
    %v935 = vtanh.pop %v934
    %937 = vrot.lane.b32.xlu0 %v935, 64
    %v938 = vpop.permute.xlu0 %937
    %v940 = vmul.f32 %v922, %v938
    %942 = vrot.lane.b32.xlu0 %v940, 32
    %v943 = vpop.permute.xlu0 %942
    %v944 = vsel %vm190, %v943, 0
    %946 = vmatpush.msra.mxu0 0.0
    %947 = vmatpush.msra.mxu0 0.0
    %948 = vmatpush.msra.mxu0 0.0
    %949 = vmatpush.msra.mxu0 0.0
    %950 = vmatpush.msra.mxu0 0.0
    %951 = vmatpush.msra.mxu0 0.0
    %952 = vmatpush.msra.mxu0 0.0
    %953 = vmatpush.msra.mxu0 0.0
    %954 = vmatpush.msra.mxu0 0.0
    %955 = vmatpush.msra.mxu0 0.0
    %956 = vmatpush.msra.mxu0 0.0
    %957 = vmatpush.msra.mxu0 0.0
    %958 = vmatpush.msra.mxu0 %v882
    %959 = vmatpush.msra.mxu0 %v881
    %960 = vmatpush.msra.mxu0 %v880
    %961 = vmatpush.msra.mxu0 %v879
    %962 = vmatmul.f32.gmra.mxu0 %v944
    %v963 = vpop.f32.mrf.mxu0
    %v964 = vadd.f32 0.0, %v963
    %965 = vdwg.mxu0
    %v967 = vrot.slane %v964, 7
    %v969 = vadd.f32 %v854, %v967
    %v970 = vxor.u32 %v969, 2147483648
    %v971 = vmul.f32 %v970, 1.442695
    %v972 = vpow.pop %v971
    %v973 = vadd.f32 %v972, 1.0
    %v974 = vrcp.pop %v973
    %v975 = vmul.f32 %v973, %v974
    %v976 = vsub.f32 1.0, %v975
    %v977 = vmul.f32 %v974, %v976
    %v978 = vadd.f32 %v974, %v977
    %vm979 = vweird.f32 %v973
    %vm980 = vweird.f32 %v974
    %vm981 = vmor %vm979, %vm980
    %v982 = vsel %vm981, %v974, %v978
    %v983 = vand.u32 2147483647, %v973
    %vm984 = vcmp.eq.f32.partialorder %v983, 8.507059e+37
    %v985 = vand.u32 %v973, 2147483648
    %v986 = vor.u32 1.1754944e-38, %v985
    %v987 = vsel %vm984, %v986, %v982
    %v988 = vmul.f32 1.0, %v987
    %v989 = vtanh.pop %v969
    %v991 = vrot.slane %v934, 7
    %v993 = vmul.f32 %v988, %v991
    %995 = vrot.lane.b32.xlu0 %v989, 64
    %v996 = vpop.permute.xlu0 %995
    %v998 = vmul.f32 %v988, %v996
    %1000 = vrot.lane.b32.xlu0 %v998, 32
    %v1001 = vpop.permute.xlu0 %1000
    %v1003 = vadd.f32 %v993, %v1001
    %v1004 = vtanh.pop %v1003
    %1006 = vrot.lane.b32.xlu0 %v1004, 64
    %v1007 = vpop.permute.xlu0 %1006
    %v1009 = vmul.f32 %v988, %v1007
    %v1011 = vrot.slane %v1009, 1
    %1012 = vrot.lane.b32.xlu0 %v1011, 32
    %v1013 = vpop.permute.xlu0 %1012
    %v1014 = vsel %vm190, %v1013, 0
    %1016 = vmatpush.msra.mxu0 0.0
    %1017 = vmatpush.msra.mxu0 0.0
    %1018 = vmatpush.msra.mxu0 0.0
    %1019 = vmatpush.msra.mxu0 0.0
    %1020 = vmatpush.msra.mxu0 0.0
    %1021 = vmatpush.msra.mxu0 0.0
    %1022 = vmatpush.msra.mxu0 0.0
    %1023 = vmatpush.msra.mxu0 0.0
    %1024 = vmatpush.msra.mxu0 0.0
    %1025 = vmatpush.msra.mxu0 0.0
    %1026 = vmatpush.msra.mxu0 0.0
    %1027 = vmatpush.msra.mxu0 0.0
    %1028 = vmatpush.msra.mxu0 %v882
    %1029 = vmatpush.msra.mxu0 %v881
    %1030 = vmatpush.msra.mxu0 %v880
    %1031 = vmatpush.msra.mxu0 %v879
    %1032 = vmatmul.f32.gmra.mxu0 %v1014
    %v1033 = vpop.f32.mrf.mxu0
    %v1034 = vadd.f32 0.0, %v1033
    %1035 = vdwg.mxu0
    %v1037 = vrot.slane %v1034, 6
    %v1039 = vadd.f32 %v860, %v1037
    %v1040 = vxor.u32 %v1039, 2147483648
    %v1041 = vmul.f32 %v1040, 1.442695
    %v1042 = vpow.pop %v1041
    %v1043 = vadd.f32 %v1042, 1.0
    %v1044 = vrcp.pop %v1043
    %v1045 = vmul.f32 %v1043, %v1044
    %v1046 = vsub.f32 1.0, %v1045
    %v1047 = vmul.f32 %v1044, %v1046
    %v1048 = vadd.f32 %v1044, %v1047
    %vm1049 = vweird.f32 %v1043
    %vm1050 = vweird.f32 %v1044
    %vm1051 = vmor %vm1049, %vm1050
    %v1052 = vsel %vm1051, %v1044, %v1048
    %v1053 = vand.u32 2147483647, %v1043
    %vm1054 = vcmp.eq.f32.partialorder %v1053, 8.507059e+37
    %v1055 = vand.u32 %v1043, 2147483648
    %v1056 = vor.u32 1.1754944e-38, %v1055
    %v1057 = vsel %vm1054, %v1056, %v1052
    %v1058 = vmul.f32 1.0, %v1057
    %v1059 = vtanh.pop %v1039
    %v1061 = vrot.slane %v1003, 7
    %v1063 = vmul.f32 %v1058, %v1061
    %1065 = vrot.lane.b32.xlu0 %v1059, 64
    %v1066 = vpop.permute.xlu0 %1065
    %v1068 = vmul.f32 %v1058, %v1066
    %1070 = vrot.lane.b32.xlu0 %v1068, 32
    %v1071 = vpop.permute.xlu0 %1070
    %v1073 = vadd.f32 %v1063, %v1071
    %v1074 = vtanh.pop %v1073
    %1076 = vrot.lane.b32.xlu0 %v1074, 64
    %v1077 = vpop.permute.xlu0 %1076
    %v1079 = vmul.f32 %v1058, %v1077
    %v1081 = vrot.slane %v1079, 2
    %1082 = vrot.lane.b32.xlu0 %v1081, 32
    %v1083 = vpop.permute.xlu0 %1082
    %v1084 = vsel %vm190, %v1083, 0
    %1086 = vmatpush.msra.mxu0 0.0
    %1087 = vmatpush.msra.mxu0 0.0
    %1088 = vmatpush.msra.mxu0 0.0
    %1089 = vmatpush.msra.mxu0 0.0
    %1090 = vmatpush.msra.mxu0 0.0
    %1091 = vmatpush.msra.mxu0 0.0
    %1092 = vmatpush.msra.mxu0 0.0
    %1093 = vmatpush.msra.mxu0 0.0
    %1094 = vmatpush.msra.mxu0 0.0
    %1095 = vmatpush.msra.mxu0 0.0
    %1096 = vmatpush.msra.mxu0 0.0
    %1097 = vmatpush.msra.mxu0 0.0
    %1098 = vmatpush.msra.mxu0 %v882
    %1099 = vmatpush.msra.mxu0 %v881
    %1100 = vmatpush.msra.mxu0 %v880
    %1101 = vmatpush.msra.mxu0 %v879
    %1102 = vmatmul.f32.gmra.mxu0 %v1084
    %v1103 = vpop.f32.mrf.mxu0
    %v1104 = vadd.f32 0.0, %v1103
    %1105 = vdwg.mxu0
    %v1107 = vrot.slane %v1104, 5
    %v1109 = vadd.f32 %v866, %v1107
    %v1110 = vxor.u32 %v1109, 2147483648
    %v1111 = vmul.f32 %v1110, 1.442695
    %v1112 = vpow.pop %v1111
    %v1113 = vadd.f32 %v1112, 1.0
    %v1114 = vrcp.pop %v1113
    %v1115 = vmul.f32 %v1113, %v1114
    %v1116 = vsub.f32 1.0, %v1115
    %v1117 = vmul.f32 %v1114, %v1116
    %v1118 = vadd.f32 %v1114, %v1117
    %vm1119 = vweird.f32 %v1113
    %vm1120 = vweird.f32 %v1114
    %vm1121 = vmor %vm1119, %vm1120
    %v1122 = vsel %vm1121, %v1114, %v1118
    %v1123 = vand.u32 2147483647, %v1113
    %vm1124 = vcmp.eq.f32.partialorder %v1123, 8.507059e+37
    %v1125 = vand.u32 %v1113, 2147483648
    %v1126 = vor.u32 1.1754944e-38, %v1125
    %v1127 = vsel %vm1124, %v1126, %v1122
    %v1128 = vmul.f32 1.0, %v1127
    %v1129 = vtanh.pop %v1109
    %v1131 = vrot.slane %v1073, 7
    %v1133 = vmul.f32 %v1128, %v1131
    %1135 = vrot.lane.b32.xlu0 %v1129, 64
    %v1136 = vpop.permute.xlu0 %1135
    %v1138 = vmul.f32 %v1128, %v1136
    %1140 = vrot.lane.b32.xlu0 %v1138, 32
    %v1141 = vpop.permute.xlu0 %1140
    %v1143 = vadd.f32 %v1133, %v1141
    %v1144 = vtanh.pop %v1143
    %1146 = vrot.lane.b32.xlu0 %v1144, 64
    %v1147 = vpop.permute.xlu0 %1146
    %v1149 = vmul.f32 %v1128, %v1147
    %v1151 = vrot.slane %v1149, 3
    %1152 = vrot.lane.b32.xlu0 %v1151, 32
    %v1153 = vpop.permute.xlu0 %1152
    %v1154 = vsel %vm190, %v1153, 0
    %1156 = vmatpush.msra.mxu0 0.0
    %1157 = vmatpush.msra.mxu0 0.0
    %1158 = vmatpush.msra.mxu0 0.0
    %1159 = vmatpush.msra.mxu0 0.0
    %1160 = vmatpush.msra.mxu0 0.0
    %1161 = vmatpush.msra.mxu0 0.0
    %1162 = vmatpush.msra.mxu0 0.0
    %1163 = vmatpush.msra.mxu0 0.0
    %1164 = vmatpush.msra.mxu0 0.0
    %1165 = vmatpush.msra.mxu0 0.0
    %1166 = vmatpush.msra.mxu0 0.0
    %1167 = vmatpush.msra.mxu0 0.0
    %1168 = vmatpush.msra.mxu0 %v882
    %1169 = vmatpush.msra.mxu0 %v881
    %1170 = vmatpush.msra.mxu0 %v880
    %1171 = vmatpush.msra.mxu0 %v879
    %1172 = vmatmul.f32.gmra.mxu0 %v1154
    %v1173 = vpop.f32.mrf.mxu0
    %v1174 = vadd.f32 0.0, %v1173
    %1175 = vdwg.mxu0
    %v1177 = vrot.slane %v1174, 4
    %v1179 = vadd.f32 %v869, %v1177
    %v1180 = vxor.u32 %v1179, 2147483648
    %v1181 = vmul.f32 %v1180, 1.442695
    %v1182 = vpow.pop %v1181
    %v1183 = vadd.f32 %v1182, 1.0
    %v1184 = vrcp.pop %v1183
    %v1185 = vmul.f32 %v1183, %v1184
    %v1186 = vsub.f32 1.0, %v1185
    %v1187 = vmul.f32 %v1184, %v1186
    %v1188 = vadd.f32 %v1184, %v1187
    %vm1189 = vweird.f32 %v1183
    %vm1190 = vweird.f32 %v1184
    %vm1191 = vmor %vm1189, %vm1190
    %v1192 = vsel %vm1191, %v1184, %v1188
    %v1193 = vand.u32 2147483647, %v1183
    %vm1194 = vcmp.eq.f32.partialorder %v1193, 8.507059e+37
    %v1195 = vand.u32 %v1183, 2147483648
    %v1196 = vor.u32 1.1754944e-38, %v1195
    %v1197 = vsel %vm1194, %v1196, %v1192
    %v1198 = vmul.f32 1.0, %v1197
    %v1199 = vtanh.pop %v1179
    %v1201 = vrot.slane %v1143, 7
    %v1203 = vmul.f32 %v1198, %v1201
    %1205 = vrot.lane.b32.xlu0 %v1199, 64
    %v1206 = vpop.permute.xlu0 %1205
    %v1208 = vmul.f32 %v1198, %v1206
    %1210 = vrot.lane.b32.xlu0 %v1208, 32
    %v1211 = vpop.permute.xlu0 %1210
    %v1213 = vadd.f32 %v1203, %v1211
    %v1214 = vtanh.pop %v1213
    %1216 = vrot.lane.b32.xlu0 %v1214, 64
    %v1217 = vpop.permute.xlu0 %1216
    %v1219 = vmul.f32 %v1198, %v1217
    %v1221 = vrot.slane %v1219, 4
    %1222 = vrot.lane.b32.xlu0 %v1221, 32
    %v1223 = vpop.permute.xlu0 %1222
    %v1224 = vsel %vm190, %v1223, 0
    %1226 = vmatpush.msra.mxu0 0.0
    %1227 = vmatpush.msra.mxu0 0.0
    %1228 = vmatpush.msra.mxu0 0.0
    %1229 = vmatpush.msra.mxu0 0.0
    %1230 = vmatpush.msra.mxu0 0.0
    %1231 = vmatpush.msra.mxu0 0.0
    %1232 = vmatpush.msra.mxu0 0.0
    %1233 = vmatpush.msra.mxu0 0.0
    %1234 = vmatpush.msra.mxu0 0.0
    %1235 = vmatpush.msra.mxu0 0.0
    %1236 = vmatpush.msra.mxu0 0.0
    %1237 = vmatpush.msra.mxu0 0.0
    %1238 = vmatpush.msra.mxu0 %v882
    %1239 = vmatpush.msra.mxu0 %v881
    %1240 = vmatpush.msra.mxu0 %v880
    %1241 = vmatpush.msra.mxu0 %v879
    %1242 = vmatmul.f32.gmra.mxu0 %v1224
    %v1243 = vpop.f32.mrf.mxu0
    %v1244 = vadd.f32 0.0, %v1243
    %1245 = vdwg.mxu0
    %v1247 = vrot.slane %v1244, 3
    %v1249 = vadd.f32 %v872, %v1247
    %v1250 = vxor.u32 %v1249, 2147483648
    %v1251 = vmul.f32 %v1250, 1.442695
    %v1252 = vpow.pop %v1251
    %v1253 = vadd.f32 %v1252, 1.0
    %v1254 = vrcp.pop %v1253
    %v1255 = vmul.f32 %v1253, %v1254
    %v1256 = vsub.f32 1.0, %v1255
    %v1257 = vmul.f32 %v1254, %v1256
    %v1258 = vadd.f32 %v1254, %v1257
    %vm1259 = vweird.f32 %v1253
    %vm1260 = vweird.f32 %v1254
    %vm1261 = vmor %vm1259, %vm1260
    %v1262 = vsel %vm1261, %v1254, %v1258
    %v1263 = vand.u32 2147483647, %v1253
    %vm1264 = vcmp.eq.f32.partialorder %v1263, 8.507059e+37
    %v1265 = vand.u32 %v1253, 2147483648
    %v1266 = vor.u32 1.1754944e-38, %v1265
    %v1267 = vsel %vm1264, %v1266, %v1262
    %v1268 = vmul.f32 1.0, %v1267
    %v1269 = vtanh.pop %v1249
    %v1271 = vrot.slane %v1213, 7
    %v1273 = vmul.f32 %v1268, %v1271
    %1275 = vrot.lane.b32.xlu0 %v1269, 64
    %v1276 = vpop.permute.xlu0 %1275
    %v1278 = vmul.f32 %v1268, %v1276
    %1280 = vrot.lane.b32.xlu0 %v1278, 32
    %v1281 = vpop.permute.xlu0 %1280
    %v1283 = vadd.f32 %v1273, %v1281
    %v1284 = vtanh.pop %v1283
    %1286 = vrot.lane.b32.xlu0 %v1284, 64
    %v1287 = vpop.permute.xlu0 %1286
    %v1289 = vmul.f32 %v1268, %v1287
    %v1291 = vrot.slane %v1289, 5
    %1292 = vrot.lane.b32.xlu0 %v1291, 32
    %v1293 = vpop.permute.xlu0 %1292
    %v1294 = vsel %vm190, %v1293, 0
    %1296 = vmatpush.msra.mxu0 0.0
    %1297 = vmatpush.msra.mxu0 0.0
    %1298 = vmatpush.msra.mxu0 0.0
    %1299 = vmatpush.msra.mxu0 0.0
    %1300 = vmatpush.msra.mxu0 0.0
    %1301 = vmatpush.msra.mxu0 0.0
    %1302 = vmatpush.msra.mxu0 0.0
    %1303 = vmatpush.msra.mxu0 0.0
    %1304 = vmatpush.msra.mxu0 0.0
    %1305 = vmatpush.msra.mxu0 0.0
    %1306 = vmatpush.msra.mxu0 0.0
    %1307 = vmatpush.msra.mxu0 0.0
    %1308 = vmatpush.msra.mxu0 %v882
    %1309 = vmatpush.msra.mxu0 %v881
    %1310 = vmatpush.msra.mxu0 %v880
    %1311 = vmatpush.msra.mxu0 %v879
    %1312 = vmatmul.f32.gmra.mxu0 %v1294
    %v1313 = vpop.f32.mrf.mxu0
    %v1314 = vadd.f32 0.0, %v1313
    %1315 = vdwg.mxu0
    %v1317 = vrot.slane %v1314, 2
    %v1319 = vadd.f32 %v875, %v1317
    %v1320 = vxor.u32 %v1319, 2147483648
    %v1321 = vmul.f32 %v1320, 1.442695
    %v1322 = vpow.pop %v1321
    %v1323 = vadd.f32 %v1322, 1.0
    %v1324 = vrcp.pop %v1323
    %v1325 = vmul.f32 %v1323, %v1324
    %v1326 = vsub.f32 1.0, %v1325
    %v1327 = vmul.f32 %v1324, %v1326
    %v1328 = vadd.f32 %v1324, %v1327
    %vm1329 = vweird.f32 %v1323
    %vm1330 = vweird.f32 %v1324
    %vm1331 = vmor %vm1329, %vm1330
    %v1332 = vsel %vm1331, %v1324, %v1328
    %v1333 = vand.u32 2147483647, %v1323
    %vm1334 = vcmp.eq.f32.partialorder %v1333, 8.507059e+37
    %v1335 = vand.u32 %v1323, 2147483648
    %v1336 = vor.u32 1.1754944e-38, %v1335
    %v1337 = vsel %vm1334, %v1336, %v1332
    %v1338 = vmul.f32 1.0, %v1337
    %v1339 = vtanh.pop %v1319
    %v1341 = vrot.slane %v1283, 7
    %v1343 = vmul.f32 %v1338, %v1341
    %1345 = vrot.lane.b32.xlu0 %v1339, 64
    %v1346 = vpop.permute.xlu0 %1345
    %v1348 = vmul.f32 %v1338, %v1346
    %1350 = vrot.lane.b32.xlu0 %v1348, 32
    %v1351 = vpop.permute.xlu0 %1350
    %v1353 = vadd.f32 %v1343, %v1351
    %v1354 = vtanh.pop %v1353
    %1356 = vrot.lane.b32.xlu0 %v1354, 64
    %v1357 = vpop.permute.xlu0 %1356
    %v1359 = vmul.f32 %v1338, %v1357
    %v1361 = vrot.slane %v1359, 6
    %1362 = vrot.lane.b32.xlu0 %v1361, 32
    %v1363 = vpop.permute.xlu0 %1362
    %v1364 = vsel %vm190, %v1363, 0
    %1366 = vmatpush.msra.mxu0 0.0
    %1367 = vmatpush.msra.mxu0 0.0
    %1368 = vmatpush.msra.mxu0 0.0
    %1369 = vmatpush.msra.mxu0 0.0
    %1370 = vmatpush.msra.mxu0 0.0
    %1371 = vmatpush.msra.mxu0 0.0
    %1372 = vmatpush.msra.mxu0 0.0
    %1373 = vmatpush.msra.mxu0 0.0
    %1374 = vmatpush.msra.mxu0 0.0
    %1375 = vmatpush.msra.mxu0 0.0
    %1376 = vmatpush.msra.mxu0 0.0
    %1377 = vmatpush.msra.mxu0 0.0
    %1378 = vmatpush.msra.mxu0 %v882
    %1379 = vmatpush.msra.mxu0 %v881
    %1380 = vmatpush.msra.mxu0 %v880
    %1381 = vmatpush.msra.mxu0 %v879
    %1382 = vmatmul.f32.gmra.mxu0 %v1364
    %v1383 = vpop.f32.mrf.mxu0
    %v1384 = vadd.f32 0.0, %v1383
    %1385 = vdwg.mxu0
    %v1387 = vrot.slane %v1384, 1
    %v1389 = vadd.f32 %v878, %v1387
    %v1390 = vxor.u32 %v1389, 2147483648
    %v1391 = vmul.f32 %v1390, 1.442695
    %v1392 = vpow.pop %v1391
    %v1393 = vadd.f32 %v1392, 1.0
    %v1394 = vrcp.pop %v1393
    %v1395 = vmul.f32 %v1393, %v1394
    %v1396 = vsub.f32 1.0, %v1395
    %v1397 = vmul.f32 %v1394, %v1396
    %v1398 = vadd.f32 %v1394, %v1397
    %vm1399 = vweird.f32 %v1393
    %vm1400 = vweird.f32 %v1394
    %vm1401 = vmor %vm1399, %vm1400
    %v1402 = vsel %vm1401, %v1394, %v1398
    %v1403 = vand.u32 2147483647, %v1393
    %vm1404 = vcmp.eq.f32.partialorder %v1403, 8.507059e+37
    %v1405 = vand.u32 %v1393, 2147483648
    %v1406 = vor.u32 1.1754944e-38, %v1405
    %v1407 = vsel %vm1404, %v1406, %v1402
    %v1408 = vmul.f32 1.0, %v1407
    %v1409 = vtanh.pop %v1389
    %v1411 = vrot.slane %v1353, 7
    %v1413 = vmul.f32 %v1408, %v1411
    %1415 = vrot.lane.b32.xlu0 %v1409, 64
    %v1416 = vpop.permute.xlu0 %1415
    %v1418 = vmul.f32 %v1408, %v1416
    %1420 = vrot.lane.b32.xlu0 %v1418, 32
    %v1421 = vpop.permute.xlu0 %1420
    %v1423 = vadd.f32 %v1413, %v1421
    %v1424 = vtanh.pop %v1423
    %1426 = vrot.lane.b32.xlu0 %v1424, 64
    %v1427 = vpop.permute.xlu0 %1426
    %v1429 = vmul.f32 %v1408, %v1427
    %v1432 = vrot.slane %v1429, 7
    %1433 = vrot.lane.b32.xlu0 %v1432, 32
    %v1434 = vpop.permute.xlu0 %1433
    %v1436 = vsel %vm572, %v943, %v1434
    %1437 = vrot.lane.b32.xlu0 %v1009, 32
    %v1438 = vpop.permute.xlu0 %1437
    %v1440 = vrot.slane %v1359, 5
    %1441 = vrot.lane.b32.xlu0 %v1440, 32
    %v1442 = vpop.permute.xlu0 %1441
    %v1444 = vsel %vm572, %v1438, %v1442
    %1445 = vrot.lane.b32.xlu0 %v1079, 32
    %v1446 = vpop.permute.xlu0 %1445
    %v1448 = vrot.slane %v1289, 3
    %1449 = vrot.lane.b32.xlu0 %v1448, 32
    %v1450 = vpop.permute.xlu0 %1449
    %v1452 = vsel %vm572, %v1446, %v1450
    %1453 = vrot.lane.b32.xlu0 %v1149, 32
    %v1454 = vpop.permute.xlu0 %1453
    %v1456 = vrot.slane %v1219, 1
    %1457 = vrot.lane.b32.xlu0 %v1456, 32
    %v1458 = vpop.permute.xlu0 %1457
    %v1460 = vsel %vm572, %v1454, %v1458
    %1461 = vrot.lane.b32.xlu0 %v1219, 32
    %v1462 = vpop.permute.xlu0 %1461
    %v1464 = vrot.slane %v1149, 7
    %1465 = vrot.lane.b32.xlu0 %v1464, 32
    %v1466 = vpop.permute.xlu0 %1465
    %v1468 = vsel %vm572, %v1462, %v1466
    %1469 = vrot.lane.b32.xlu0 %v1289, 32
    %v1470 = vpop.permute.xlu0 %1469
    %v1472 = vrot.slane %v1079, 5
    %1473 = vrot.lane.b32.xlu0 %v1472, 32
    %v1474 = vpop.permute.xlu0 %1473
    %v1476 = vsel %vm572, %v1470, %v1474
    %1477 = vrot.lane.b32.xlu0 %v1359, 32
    %v1478 = vpop.permute.xlu0 %1477
    %v1480 = vrot.slane %v1009, 3
    %1481 = vrot.lane.b32.xlu0 %v1480, 32
    %v1482 = vpop.permute.xlu0 %1481
    %v1484 = vsel %vm572, %v1478, %v1482
    %1485 = vrot.lane.b32.xlu0 %v1429, 32
    %v1486 = vpop.permute.xlu0 %1485
    %v1488 = vrot.slane %v940, 1
    %1489 = vrot.lane.b32.xlu0 %v1488, 32
    %v1490 = vpop.permute.xlu0 %1489
    %v1492 = vsel %vm572, %v1486, %v1490
    %vm1493 = vcmask 1040384
    %v1494 = vsel %vm1493, %v1436, %v1444
    %vm1495 = vcmask 1041408
    %v1496 = vsel %vm1495, %v1494, %v1452
    %vm1497 = vcmask 1042432
    %v1498 = vsel %vm1497, %v1496, %v1460
    %vm1499 = vcmask 1043456
    %v1500 = vsel %vm1499, %v1498, %v1468
    %vm1501 = vcmask 1044480
    %v1502 = vsel %vm1501, %v1500, %v1476
    %vm1503 = vcmask 1045504
    %v1504 = vsel %vm1503, %v1502, %v1484
    %vm1505 = vcmask 1046528
    %v1506 = vsel %vm1505, %v1504, %v1492
    %v1507 = vld [vmem:[#allocation2 + $0x1e0] sm:$0xff]
    %v1508 = vld [vmem:[#allocation2 + $0x1e8] sm:$0xff]
    %v1509 = vld [vmem:[#allocation2 + $0x1f0] sm:$0xff]
    %v1510 = vld [vmem:[#allocation2 + $0x1f8] sm:$0xff]
    %v1511 = vld [vmem:[#allocation2 + $0x204] sm:$0x1]
    %v1512 = vperm.slane %v1511, 0
    %v1514 = vsel %vm190, %v1506, 0
    %1516 = vmatpush.msra.mxu0 0.0
    %1517 = vmatpush.msra.mxu0 0.0
    %1518 = vmatpush.msra.mxu0 0.0
    %1519 = vmatpush.msra.mxu0 0.0
    %1520 = vmatpush.msra.mxu0 0.0
    %1521 = vmatpush.msra.mxu0 0.0
    %1522 = vmatpush.msra.mxu0 0.0
    %1523 = vmatpush.msra.mxu0 0.0
    %1524 = vmatpush.msra.mxu0 0.0
    %1525 = vmatpush.msra.mxu0 0.0
    %1526 = vmatpush.msra.mxu0 0.0
    %1527 = vmatpush.msra.mxu0 0.0
    %1528 = vmatpush.msra.mxu0 %v1510
    %1529 = vmatpush.msra.mxu0 %v1509
    %1530 = vmatpush.msra.mxu0 %v1508
    %1531 = vmatpush.msra.mxu0 %v1507
    %1532 = vmatmul.f32.gmra.mxu0 %v1514
    %v1533 = vpop.f32.mrf.mxu0
    %v1534 = vadd.f32 %v1512, %v1533
    %1535 = vdwg.mxu0
    %vm1536 = vcmask 64512
    %v1537 = vsel %vm1536, %v1534, -inf
    %1538 = vmax.xlane.f32.xlu0 %v1537
    %v1539 = vpop.xlane.xlu0 %1538
    %v1540 = vsub.f32 %v1534, %v1539
    %v1541 = vmul.f32 %v1540, 1.442695
    %v1542 = vpow.pop %v1541
    %v1543 = vsel %vm1536, %v1542, 0.0
    %1544 = vadd.xlane.f32.xlu0 %v1543
    %v1545 = vpop.xlane.xlu0 %1544
    %v1546 = vlog2.pop %v1545
    %v1547 = vmul.f32 %v1546, 0.6931472
    %v1548 = vsub.f32 %v1540, %v1547
    %vm1549 = vcmask 113728
    %v1550 = vsel %vm1549, %v1534, -inf
    %1551 = vmax.xlane.f32.xlu0 %v1550
    %v1552 = vpop.xlane.xlu0 %1551
    %v1553 = vsub.f32 %v1534, %v1552
    %v1554 = vmul.f32 %v1553, 1.442695
    %v1555 = vpow.pop %v1554
    %1557 = vrot.lane.b32.xlu0 %v1555, 120
    %v1558 = vpop.permute.xlu0 %1557
    %vm1560 = vcmask 48128
    %v1561 = vsel %vm1560, %v1558, 0.0
    %1562 = vadd.xlane.f32.xlu0 %v1561
    %v1563 = vpop.xlane.xlu0 %1562
    %v1564 = vlog2.pop %v1563
    %v1565 = vmul.f32 %v1564, 0.6931472
    %v1566 = vsub.f32 %v1553, %v1565
    %v1567 = vsel %vm1536, %v1548, %v1566
    %vm1568 = vcmask 113664
    %1569 = vst.msk [vmem:[%s3] sm:$0xff] %vm1568, %v1567
    // Predicated region
    $region18: #{forward.1} parent=1 // pred_check
      _
    $region19: #{forward.1} parent=1 // pred_check_branch
      %1571 = sbr.rel (0) target = $region21
    $region20: #{forward.1} parent=1 // pred_region
      _
    $region21: #{forward.1} parent=1 // pred_fallthru
      _
    // Predicated region
    $region22: #{forward.1} parent=1 // pred_check
      _
    $region23: #{forward.1} parent=1 // pred_check_branch
      %1573 = sbr.rel (0) target = $region25
    $region24: #{forward.1} parent=1 // pred_region
      _
    $region25: #{forward.1} parent=1 // pred_fallthru
      _
    %1574 = vsyncpa [#allocation3], 1

</llo_original>
